<compile_context>
chip_gen: v6e
topology: v6e:2x2x1
jax: 0.10.0
libtpu: 0.0.40
codegen_flags: <defaults>
</compile_context>

<pallas_src>
import jax
import jax.numpy as jnp
from jax.experimental import pallas as pl
from jax.experimental.pallas import tpu as pltpu

MAX_PLANES = 5
ACTION_DIM = 13 * MAX_PLANES   # 65
STATE_DIM = 6 * MAX_PLANES     # 30
HIDDEN = 256

PADDED_IN = 32     # 30 -> 32 (minor lane-layout cleanliness)
PADDED_OUT = 128   # 65 -> 128 (lane-dense output stores, full MXU N tile)


def dqn_kernel(x_ref, w1_ref, b1_ref, w2_ref, b2_ref, w3_ref, b3_ref, out_ref):
    # fc1 + ReLU
    h1 = jnp.dot(x_ref[...], w1_ref[...], preferred_element_type=jnp.float32) + b1_ref[...]
    h1 = jnp.maximum(h1, 0.0)
    # fc2 + ReLU
    h2 = jnp.dot(h1, w2_ref[...], preferred_element_type=jnp.float32) + b2_ref[...]
    h2 = jnp.maximum(h2, 0.0)
    # fc3 (no activation), written to the padded 128-wide output tile
    out_ref[...] = jnp.dot(h2, w3_ref[...], preferred_element_type=jnp.float32) + b3_ref[...]


def dqn_forward(x, params, *, bm=512):
    """x: [B, STATE_DIM] float32. params: dict of pre-transposed weights/biases.

    bm is the batch tile; sweep 256-1024 for large batches. It is clamped to B
    for small batches.
    """
    B, D = x.shape
    assert D == STATE_DIM
    bm = min(bm, B)
    assert B % bm == 0, "batch must be a multiple of the batch tile"

    # Pad input features 30 -> 32 and output 65 -> 128 with zeros. The extra
    # zero columns of x hit zero rows of w1, and the padded output columns are
    # sliced off below, so the math is unchanged.
    x_p = jnp.pad(x, ((0, 0), (0, PADDED_IN - STATE_DIM)))
    w1 = jnp.pad(params["w1"], ((0, PADDED_IN - STATE_DIM), (0, 0)))   # [32, 256]
    b1 = params["b1"]                                                  # [1, 256]
    w2, b2 = params["w2"], params["b2"]                                # [256,256], [1,256]
    w3 = jnp.pad(params["w3"], ((0, 0), (0, PADDED_OUT - ACTION_DIM)))  # [256, 128]
    b3 = jnp.pad(params["b3"], ((0, 0), (0, PADDED_OUT - ACTION_DIM)))  # [1, 128]

    grid = (B // bm,)

    # Weights/biases are small (< 0.4 MiB total) and grid-invariant: constant
    # index_maps keep them resident across the batch loop.
    full = lambda shape: pl.BlockSpec(shape, lambda i: (0,) * len(shape))

    flops = 2 * B * (PADDED_IN * HIDDEN + HIDDEN * HIDDEN + HIDDEN * PADDED_OUT)
    bytes_accessed = 4 * (
        x_p.size + B * PADDED_OUT
        + w1.size + b1.size + w2.size + b2.size + w3.size + b3.size
    )

    out_padded = pl.pallas_call(
        dqn_kernel,
        out_shape=jax.ShapeDtypeStruct((B, PADDED_OUT), jnp.float32),
        grid_spec=pltpu.PrefetchScalarGridSpec(
            num_scalar_prefetch=0,
            grid=grid,
            in_specs=[
                pl.BlockSpec((bm, PADDED_IN), lambda i: (i, 0)),  # x tile
                full(w1.shape), full(b1.shape),
                full(w2.shape), full(b2.shape),
                full(w3.shape), full(b3.shape),
            ],
            out_specs=pl.BlockSpec((bm, PADDED_OUT), lambda i: (i, 0)),
        ),
        compiler_params=pltpu.CompilerParams(
            dimension_semantics=("parallel",),   # batch axis shards across TCs (v7x)
        ),
        cost_estimate=pl.CostEstimate(
            flops=flops, transcendentals=0, bytes_accessed=bytes_accessed),
    )(x_p, w1, b1, w2, b2, w3, b3)

    return out_padded[:, :ACTION_DIM]


def init_params(key):
    """Deterministic init mimicking nn.Linear (uniform in +-1/sqrt(fan_in)).
    Weights stored as [in, out] (transposed vs. PyTorch's [out, in])."""
    ks = jax.random.split(key, 6)

    def linear(kw, kb, fan_in, fan_out):
        bound = 1.0 / jnp.sqrt(fan_in)
        w = jax.random.uniform(kw, (fan_in, fan_out), jnp.float32, -bound, bound)
        b = jax.random.uniform(kb, (1, fan_out), jnp.float32, -bound, bound)
        return w, b

    w1, b1 = linear(ks[0], ks[1], STATE_DIM, HIDDEN)
    w2, b2 = linear(ks[2], ks[3], HIDDEN, HIDDEN)
    w3, b3 = linear(ks[4], ks[5], HIDDEN, ACTION_DIM)
    return {"w1": w1, "b1": b1, "w2": w2, "b2": b2, "w3": w3, "b3": b3}


def dqn_reference(x, params):
    h1 = jnp.maximum(x @ params["w1"] + params["b1"], 0.0)
    h2 = jnp.maximum(h1 @ params["w2"] + params["b2"], 0.0)
    return h2 @ params["w3"] + params["b3"]


if __name__ == "__main__":
    key = jax.random.PRNGKey(0)
    kp, kx = jax.random.split(key)
    params = init_params(kp)

    # 1024 rows / bm=512 -> 2 parallel grid steps (lets v7x use both TCs);
    # total data is still tiny (~120 KiB of activations).
    batch = 1024
    x = jax.random.normal(kx, (batch, STATE_DIM), jnp.float32)

    out = dqn_forward(x, params, bm=512)
    out = jax.block_until_ready(out)

    ref = dqn_reference(x, params)
    assert out.shape == (batch, ACTION_DIM), out.shape
    assert jnp.allclose(out, ref, atol=1e-4, rtol=1e-4), "mismatch vs reference"

    # Also exercise the small-batch path (bm clamps to B).
    x_small = x[:8]
    out_small = jax.block_until_ready(dqn_forward(x_small, params))
    assert jnp.allclose(out_small, ref[:8], atol=1e-4, rtol=1e-4), "small-batch mismatch"

    print("KERNEL_OK")
</pallas_src>

<mosaic_0001>
module attributes {stable_mosaic.version = 11 : i64} {
  func.func @dqn_kernel(%arg0: i32, %arg1: memref<512x32xf32, #tpu.memory_space<vmem>>, %arg2: memref<32x256xf32, #tpu.memory_space<vmem>>, %arg3: memref<1x256xf32, #tpu.memory_space<vmem>>, %arg4: memref<256x256xf32, #tpu.memory_space<vmem>>, %arg5: memref<1x256xf32, #tpu.memory_space<vmem>>, %arg6: memref<256x128xf32, #tpu.memory_space<vmem>>, %arg7: memref<1x128xf32, #tpu.memory_space<vmem>>, %arg8: memref<512x128xf32, #tpu.memory_space<vmem>>) attributes {dimension_semantics = [#tpu.dimension_semantics<parallel>], iteration_bounds = array<i64: 2>, scalar_prefetch = 0 : i64, scratch_operands = 0 : i64, tpu.core_type = #tpu.core_type<tc>, window_params = [{transform_indices = @transform_0, window_bounds = array<i64: 512, 32>}, {pipeline_mode = #tpu.pipeline_mode<synchronous>, transform_indices = @transform_1, window_bounds = array<i64: 32, 256>}, {pipeline_mode = #tpu.pipeline_mode<synchronous>, transform_indices = @transform_2, window_bounds = array<i64: 1, 256>}, {pipeline_mode = #tpu.pipeline_mode<synchronous>, transform_indices = @transform_3, window_bounds = array<i64: 256, 256>}, {pipeline_mode = #tpu.pipeline_mode<synchronous>, transform_indices = @transform_4, window_bounds = array<i64: 1, 256>}, {pipeline_mode = #tpu.pipeline_mode<synchronous>, transform_indices = @transform_5, window_bounds = array<i64: 256, 128>}, {pipeline_mode = #tpu.pipeline_mode<synchronous>, transform_indices = @transform_6, window_bounds = array<i64: 1, 128>}, {transform_indices = @transform_7, window_bounds = array<i64: 512, 128>}]} {
    %c0 = arith.constant 0 : index
    %c0_0 = arith.constant 0 : index
    %0 = vector.load %arg1[%c0, %c0_0] : memref<512x32xf32, #tpu.memory_space<vmem>>, vector<512x32xf32>
    %c0_1 = arith.constant 0 : index
    %c0_2 = arith.constant 0 : index
    %1 = vector.load %arg2[%c0_1, %c0_2] : memref<32x256xf32, #tpu.memory_space<vmem>>, vector<32x256xf32>
    %cst = arith.constant dense<0.000000e+00> : vector<512x256xf32>
    %2 = tpu.matmul %0, %1, %cst {dimension_numbers = #tpu.dot_dimension_numbers<[1], [0], [0], [1], [0, 0, 1, 1], [], []>} : vector<512x32xf32>, vector<32x256xf32>, vector<512x256xf32> -> vector<512x256xf32>
    %c0_3 = arith.constant 0 : index
    %c0_4 = arith.constant 0 : index
    %3 = vector.load %arg3[%c0_3, %c0_4] : memref<1x256xf32, #tpu.memory_space<vmem>>, vector<1x256xf32>
    %4 = vector.broadcast %3 : vector<1x256xf32> to vector<512x256xf32>
    %5 = arith.addf %2, %4 : vector<512x256xf32>
    %cst_5 = arith.constant 0.000000e+00 : f32
    %6 = vector.broadcast %cst_5 : f32 to vector<512x256xf32>
    %7 = arith.maximumf %5, %6 : vector<512x256xf32>
    %c0_6 = arith.constant 0 : index
    %c0_7 = arith.constant 0 : index
    %8 = vector.load %arg4[%c0_6, %c0_7] : memref<256x256xf32, #tpu.memory_space<vmem>>, vector<256x256xf32>
    %cst_8 = arith.constant dense<0.000000e+00> : vector<512x256xf32>
    %9 = tpu.matmul %7, %8, %cst_8 {dimension_numbers = #tpu.dot_dimension_numbers<[1], [0], [0], [1], [0, 0, 1, 1], [], []>} : vector<512x256xf32>, vector<256x256xf32>, vector<512x256xf32> -> vector<512x256xf32>
    %c0_9 = arith.constant 0 : index
    %c0_10 = arith.constant 0 : index
    %10 = vector.load %arg5[%c0_9, %c0_10] : memref<1x256xf32, #tpu.memory_space<vmem>>, vector<1x256xf32>
    %11 = vector.broadcast %10 : vector<1x256xf32> to vector<512x256xf32>
    %12 = arith.addf %9, %11 : vector<512x256xf32>
    %cst_11 = arith.constant 0.000000e+00 : f32
    %13 = vector.broadcast %cst_11 : f32 to vector<512x256xf32>
    %14 = arith.maximumf %12, %13 : vector<512x256xf32>
    %c0_12 = arith.constant 0 : index
    %c0_13 = arith.constant 0 : index
    %15 = vector.load %arg6[%c0_12, %c0_13] : memref<256x128xf32, #tpu.memory_space<vmem>>, vector<256x128xf32>
    %cst_14 = arith.constant dense<0.000000e+00> : vector<512x128xf32>
    %16 = tpu.matmul %14, %15, %cst_14 {dimension_numbers = #tpu.dot_dimension_numbers<[1], [0], [0], [1], [0, 0, 1, 1], [], []>} : vector<512x256xf32>, vector<256x128xf32>, vector<512x128xf32> -> vector<512x128xf32>
    %c0_15 = arith.constant 0 : index
    %c0_16 = arith.constant 0 : index
    %17 = vector.load %arg7[%c0_15, %c0_16] : memref<1x128xf32, #tpu.memory_space<vmem>>, vector<1x128xf32>
    %18 = vector.broadcast %17 : vector<1x128xf32> to vector<512x128xf32>
    %19 = arith.addf %16, %18 : vector<512x128xf32>
    %c0_17 = arith.constant 0 : index
    %c0_18 = arith.constant 0 : index
    %20 = vector.load %arg8[%c0_17, %c0_18] : memref<512x128xf32, #tpu.memory_space<vmem>>, vector<512x128xf32>
    tpu.vector_store %arg8[%c0_17, %c0_18], %19 {strides = array<i32>} : memref<512x128xf32, #tpu.memory_space<vmem>>, vector<512x128xf32>,
    return
  }
  func.func @transform_0(%arg0: i32) -> (i32, i32) {
    %c0_i32 = arith.constant 0 : i32
    %c0_i32_0 = arith.constant 0 : i32
    return %arg0, %c0_i32 : i32, i32
  }
  func.func @transform_1(%arg0: i32) -> (i32, i32) {
    %c0_i32 = arith.constant 0 : i32
    %c0_i32_0 = arith.constant 0 : i32
    %c0_i32_1 = arith.constant 0 : i32
    return %c0_i32, %c0_i32_0 : i32, i32
  }
  func.func @transform_2(%arg0: i32) -> (i32, i32) {
    %c0_i32 = arith.constant 0 : i32
    %c0_i32_0 = arith.constant 0 : i32
    %c0_i32_1 = arith.constant 0 : i32
    return %c0_i32, %c0_i32_0 : i32, i32
  }
  func.func @transform_3(%arg0: i32) -> (i32, i32) {
    %c0_i32 = arith.constant 0 : i32
    %c0_i32_0 = arith.constant 0 : i32
    %c0_i32_1 = arith.constant 0 : i32
    return %c0_i32, %c0_i32_0 : i32, i32
  }
  func.func @transform_4(%arg0: i32) -> (i32, i32) {
    %c0_i32 = arith.constant 0 : i32
    %c0_i32_0 = arith.constant 0 : i32
    %c0_i32_1 = arith.constant 0 : i32
    return %c0_i32, %c0_i32_0 : i32, i32
  }
  func.func @transform_5(%arg0: i32) -> (i32, i32) {
    %c0_i32 = arith.constant 0 : i32
    %c0_i32_0 = arith.constant 0 : i32
    %c0_i32_1 = arith.constant 0 : i32
    return %c0_i32, %c0_i32_0 : i32, i32
  }
  func.func @transform_6(%arg0: i32) -> (i32, i32) {
    %c0_i32 = arith.constant 0 : i32
    %c0_i32_0 = arith.constant 0 : i32
    %c0_i32_1 = arith.constant 0 : i32
    return %c0_i32, %c0_i32_0 : i32, i32
  }
  func.func @transform_7(%arg0: i32) -> (i32, i32) {
    %c0_i32 = arith.constant 0 : i32
    %c0_i32_0 = arith.constant 0 : i32
    return %arg0, %c0_i32 : i32, i32
  }
}

</mosaic_0001>

<llo_original>
// kernel: tpu_custom_call.1
$region0: #{tpu_custom_call.1}
  #allocation0 [shape = 'u32[]', space=smem, size = 0x4, offset = 0x4, fixed_abs, tag = 'smem constant byte address 0x4 - core index']
  #allocation1 [shape = 'u32[144,128]{1,0:T(1,128)}', space=vmem, size = 0x12000, scoped, tag = 'internal scratch']
  %s0 = inlined_call_operand.vmem [shape: f32[1024,32], index: 0, kind: input, shape index: {}]
  %s1 = inlined_call_operand.vmem [shape: f32[32,256], index: 1, kind: input, shape index: {}]
  %s2 = inlined_call_operand.vmem [shape: f32[1,256], index: 2, kind: input, shape index: {}]
  %s3 = inlined_call_operand.vmem [shape: f32[256,256], index: 3, kind: input, shape index: {}]
  %s4 = inlined_call_operand.vmem [shape: f32[1,256], index: 4, kind: input, shape index: {}]
  %s5 = inlined_call_operand.vmem [shape: f32[256,128], index: 5, kind: input, shape index: {}]
  %s6 = inlined_call_operand.vmem [shape: f32[1,128], index: 6, kind: input, shape index: {}]
  %s7 = inlined_call_operand.hbm [shape: f32[1024,128], index: 7, kind: output, shape index: {}]
  %s8 = sld [smem:[#allocation0]]
  $region61: #{tpu_custom_call.1} parent=0
    _
  %s10 = ssub.s32 1, %s8
  %s11 = scalar_select 0, %s10, %s8
  $region1: #{tpu_custom_call.1} parent=0
    #allocation2 [shape = 'u8[524288]{0}', space=vmem, size = 0x80000, scoped, tag = 'output window, operand 0']
    #allocation3 [shape = 's32[2]{0}', space=sflag, size = 0x8, scoped, tag = 'scoped memory for tpu_custom_call.1']
    %12 = vsyncpa [#allocation3], 0
    %s13 = scalar_lea.sflag [#allocation3], 1
    %14 = vsyncpa %s13, 0
    loop: start=0, step=1, limit=4
    $region2: #{tpu_custom_call.1} parent=1 // loop_pre_header
      _
    $region3: #{tpu_custom_call.1} parent=1 // loop_header
      %s16 = sphi 0, %s20
      %p17 = scmp.ge.s32.totalorder %s16, 4
      %s26 = sphi 0, %s28
      %s29 = sphi 0, %s26
      %s30 = sphi 0, %s29
      %s46 = sphi 0, %s30
      %s50 = sphi 0, %s50
      %s52 = sphi 0, %s50
      %s53 = sphi 0, %s52
      %s67 = sphi 0, %s53
      %s71 = sphi 0, %s71
      %s73 = sphi 0, %s71
      %s74 = sphi 0, %s73
      %s88 = sphi 0, %s74
      %s92 = sphi 0, %s92
      %s94 = sphi 0, %s92
      %s95 = sphi 0, %s94
      %s109 = sphi 0, %s95
      %s113 = sphi 0, %s113
      %s115 = sphi 0, %s113
      %s116 = sphi 0, %s115
      %s130 = sphi 0, %s116
      %s134 = sphi 0, %s134
      %s136 = sphi 0, %s134
      %s137 = sphi 0, %s136
      %s151 = sphi 0, %s137
      %s155 = sphi 0, %s155
      %s157 = sphi 0, %s155
      %s158 = sphi 0, %s157
      %s172 = sphi 0, %s158
      %s178 = sphi 0, %s180
      %s181 = sphi 0, %s178
      %s182 = sphi 0, %s181
      %s198 = sphi 0, %s182
    $region4: #{tpu_custom_call.1} parent=1 // loop_header_branch
      %19 = sbr.rel (%p17) target = $region8
    $region5: #{tpu_custom_call.1} parent=1 // loop_body
      %s21 = ssub.s32 %s16, 1
      %s22 = ssub.s32 %s16, 2
      %s23 = sadd.s32 %s16, 1
      %s24 = ssub.s32 %s16, %s23
      %p25 = scmp.eq.s32.totalorder %s24, 0
      %s27 = sadd.s32 %s26, 1
      %s28 = scalar_select %p25, %s26, %s27
      %p31 = pneg %p25
      %p32 = scmp.eq.s32.totalorder %s16, 1
      %p33 = por %p31, %p32
      %p34 = scmp.ne.s32.totalorder %s26, %s29
      %p35 = scmp.eq.s32.totalorder %s16, 0
      %p36 = por %p34, %p35
      %p37 = scmp.ne.s32.totalorder %s26, %s29
      %p38 = scmp.eq.s32.totalorder %s21, 1
      %p39 = por %p37, %p38
      %p40 = scmp.ne.s32.totalorder %s29, %s30
      %p41 = scmp.eq.s32.totalorder %s21, 0
      %p42 = por %p40, %p41
      %p43 = scmp.ne.s32.totalorder %s29, %s30
      %p44 = scmp.eq.s32.totalorder %s22, 1
      %p45 = por %p43, %p44
      %p47 = scmp.ne.s32.totalorder %s30, %s46
      %p48 = scmp.eq.s32.totalorder %s22, 0
      %p49 = por %p47, %p48
      %s51 = sadd.s32 %s50, 1
      %p54 = scmp.eq.s32.totalorder %s16, 1
      %p55 = scmp.ne.s32.totalorder %s50, %s52
      %p56 = scmp.eq.s32.totalorder %s16, 0
      %p57 = por %p55, %p56
      %p58 = scmp.ne.s32.totalorder %s50, %s52
      %p59 = scmp.eq.s32.totalorder %s21, 1
      %p60 = por %p58, %p59
      %p61 = scmp.ne.s32.totalorder %s52, %s53
      %p62 = scmp.eq.s32.totalorder %s21, 0
      %p63 = por %p61, %p62
      %p64 = scmp.ne.s32.totalorder %s52, %s53
      %p65 = scmp.eq.s32.totalorder %s22, 1
      %p66 = por %p64, %p65
      %p68 = scmp.ne.s32.totalorder %s53, %s67
      %p69 = scmp.eq.s32.totalorder %s22, 0
      %p70 = por %p68, %p69
      %s72 = sadd.s32 %s71, 1
      %p75 = scmp.eq.s32.totalorder %s16, 1
      %p76 = scmp.ne.s32.totalorder %s71, %s73
      %p77 = scmp.eq.s32.totalorder %s16, 0
      %p78 = por %p76, %p77
      %p79 = scmp.ne.s32.totalorder %s71, %s73
      %p80 = scmp.eq.s32.totalorder %s21, 1
      %p81 = por %p79, %p80
      %p82 = scmp.ne.s32.totalorder %s73, %s74
      %p83 = scmp.eq.s32.totalorder %s21, 0
      %p84 = por %p82, %p83
      %p85 = scmp.ne.s32.totalorder %s73, %s74
      %p86 = scmp.eq.s32.totalorder %s22, 1
      %p87 = por %p85, %p86
      %p89 = scmp.ne.s32.totalorder %s74, %s88
      %p90 = scmp.eq.s32.totalorder %s22, 0
      %p91 = por %p89, %p90
      %s93 = sadd.s32 %s92, 1
      %p96 = scmp.eq.s32.totalorder %s16, 1
      %p97 = scmp.ne.s32.totalorder %s92, %s94
      %p98 = scmp.eq.s32.totalorder %s16, 0
      %p99 = por %p97, %p98
      %p100 = scmp.ne.s32.totalorder %s92, %s94
      %p101 = scmp.eq.s32.totalorder %s21, 1
      %p102 = por %p100, %p101
      %p103 = scmp.ne.s32.totalorder %s94, %s95
      %p104 = scmp.eq.s32.totalorder %s21, 0
      %p105 = por %p103, %p104
      %p106 = scmp.ne.s32.totalorder %s94, %s95
      %p107 = scmp.eq.s32.totalorder %s22, 1
      %p108 = por %p106, %p107
      %p110 = scmp.ne.s32.totalorder %s95, %s109
      %p111 = scmp.eq.s32.totalorder %s22, 0
      %p112 = por %p110, %p111
      %s114 = sadd.s32 %s113, 1
      %p117 = scmp.eq.s32.totalorder %s16, 1
      %p118 = scmp.ne.s32.totalorder %s113, %s115
      %p119 = scmp.eq.s32.totalorder %s16, 0
      %p120 = por %p118, %p119
      %p121 = scmp.ne.s32.totalorder %s113, %s115
      %p122 = scmp.eq.s32.totalorder %s21, 1
      %p123 = por %p121, %p122
      %p124 = scmp.ne.s32.totalorder %s115, %s116
      %p125 = scmp.eq.s32.totalorder %s21, 0
      %p126 = por %p124, %p125
      %p127 = scmp.ne.s32.totalorder %s115, %s116
      %p128 = scmp.eq.s32.totalorder %s22, 1
      %p129 = por %p127, %p128
      %p131 = scmp.ne.s32.totalorder %s116, %s130
      %p132 = scmp.eq.s32.totalorder %s22, 0
      %p133 = por %p131, %p132
      %s135 = sadd.s32 %s134, 1
      %p138 = scmp.eq.s32.totalorder %s16, 1
      %p139 = scmp.ne.s32.totalorder %s134, %s136
      %p140 = scmp.eq.s32.totalorder %s16, 0
      %p141 = por %p139, %p140
      %p142 = scmp.ne.s32.totalorder %s134, %s136
      %p143 = scmp.eq.s32.totalorder %s21, 1
      %p144 = por %p142, %p143
      %p145 = scmp.ne.s32.totalorder %s136, %s137
      %p146 = scmp.eq.s32.totalorder %s21, 0
      %p147 = por %p145, %p146
      %p148 = scmp.ne.s32.totalorder %s136, %s137
      %p149 = scmp.eq.s32.totalorder %s22, 1
      %p150 = por %p148, %p149
      %p152 = scmp.ne.s32.totalorder %s137, %s151
      %p153 = scmp.eq.s32.totalorder %s22, 0
      %p154 = por %p152, %p153
      %s156 = sadd.s32 %s155, 1
      %p159 = scmp.eq.s32.totalorder %s16, 1
      %p160 = scmp.ne.s32.totalorder %s155, %s157
      %p161 = scmp.eq.s32.totalorder %s16, 0
      %p162 = por %p160, %p161
      %p163 = scmp.ne.s32.totalorder %s155, %s157
      %p164 = scmp.eq.s32.totalorder %s21, 1
      %p165 = por %p163, %p164
      %p166 = scmp.ne.s32.totalorder %s157, %s158
      %p167 = scmp.eq.s32.totalorder %s21, 0
      %p168 = por %p166, %p167
      %p169 = scmp.ne.s32.totalorder %s157, %s158
      %p170 = scmp.eq.s32.totalorder %s22, 1
      %p171 = por %p169, %p170
      %p173 = scmp.ne.s32.totalorder %s158, %s172
      %p174 = scmp.eq.s32.totalorder %s22, 0
      %p175 = por %p173, %p174
      %s176 = ssub.s32 %s16, %s23
      %p177 = scmp.eq.s32.totalorder %s176, 0
      %s179 = sadd.s32 %s178, 1
      %s180 = scalar_select %p177, %s178, %s179
      %p183 = pneg %p177
      %p184 = scmp.eq.s32.totalorder %s16, 1
      %p185 = por %p183, %p184
      %p186 = scmp.ne.s32.totalorder %s178, %s181
      %p187 = scmp.eq.s32.totalorder %s16, 0
      %p188 = por %p186, %p187
      %p189 = scmp.ne.s32.totalorder %s178, %s181
      %p190 = scmp.eq.s32.totalorder %s21, 1
      %p191 = por %p189, %p190
      %p192 = scmp.ne.s32.totalorder %s181, %s182
      %p193 = scmp.eq.s32.totalorder %s21, 0
      %p194 = por %p192, %p193
      %p195 = scmp.ne.s32.totalorder %s181, %s182
      %p196 = scmp.eq.s32.totalorder %s22, 1
      %p197 = por %p195, %p196
      %p199 = scmp.ne.s32.totalorder %s182, %s198
      %p200 = scmp.eq.s32.totalorder %s22, 0
      %p201 = por %p199, %p200
      %p202 = scmp.le.s32.totalorder 1, %s16
      %p203 = scmp.lt.s32.totalorder %s16, 3
      %p204 = pnand %p202, %p203
      %p205 = pneg %p204
      // Predicated region
      $region9: #{tpu_custom_call.1} parent=5 // pred_check
        _
      $region10: #{tpu_custom_call.1} parent=5 // pred_check_branch
        %207 = sbr.rel (%p204) target = $region12
      $region11: #{tpu_custom_call.1} parent=5 // pred_region
        %s208 = ssub.s32 %s16, 1
        // Predicated region
        $region13: #{tpu_custom_call.1} parent=11 // pred_check
          %p209 = pneg %p63
        $region14: #{tpu_custom_call.1} parent=11 // pred_check_branch
          %211 = sbr.rel (%p209) target = $region16
        $region15: #{tpu_custom_call.1} parent=11 // pred_region
          _
        $region16: #{tpu_custom_call.1} parent=11 // pred_fallthru
          _
        // Predicated region
        $region17: #{tpu_custom_call.1} parent=11 // pred_check
          %p212 = pneg %p84
        $region18: #{tpu_custom_call.1} parent=11 // pred_check_branch
          %214 = sbr.rel (%p212) target = $region20
        $region19: #{tpu_custom_call.1} parent=11 // pred_region
          _
        $region20: #{tpu_custom_call.1} parent=11 // pred_fallthru
          _
        // Predicated region
        $region21: #{tpu_custom_call.1} parent=11 // pred_check
          %p215 = pneg %p105
        $region22: #{tpu_custom_call.1} parent=11 // pred_check_branch
          %217 = sbr.rel (%p215) target = $region24
        $region23: #{tpu_custom_call.1} parent=11 // pred_region
          _
        $region24: #{tpu_custom_call.1} parent=11 // pred_fallthru
          _
        // Predicated region
        $region25: #{tpu_custom_call.1} parent=11 // pred_check
          %p218 = pneg %p126
        $region26: #{tpu_custom_call.1} parent=11 // pred_check_branch
          %220 = sbr.rel (%p218) target = $region28
        $region27: #{tpu_custom_call.1} parent=11 // pred_region
          _
        $region28: #{tpu_custom_call.1} parent=11 // pred_fallthru
          _
        // Predicated region
        $region29: #{tpu_custom_call.1} parent=11 // pred_check
          %p221 = pneg %p147
        $region30: #{tpu_custom_call.1} parent=11 // pred_check_branch
          %223 = sbr.rel (%p221) target = $region32
        $region31: #{tpu_custom_call.1} parent=11 // pred_region
          _
        $region32: #{tpu_custom_call.1} parent=11 // pred_fallthru
          _
        // Predicated region
        $region33: #{tpu_custom_call.1} parent=11 // pred_check
          %p224 = pneg %p168
        $region34: #{tpu_custom_call.1} parent=11 // pred_check_branch
          %226 = sbr.rel (%p224) target = $region36
        $region35: #{tpu_custom_call.1} parent=11 // pred_region
          _
        $region36: #{tpu_custom_call.1} parent=11 // pred_fallthru
          _
      $region12: #{tpu_custom_call.1} parent=5 // pred_fallthru
        _
      %p227 = scmp.lt.s32.totalorder %s16, 2
      // Predicated region
      $region37: #{tpu_custom_call.1} parent=5 // pred_check
        %p228 = pneg %p227
      $region38: #{tpu_custom_call.1} parent=5 // pred_check_branch
        %230 = sbr.rel (%p228) target = $region40
      $region39: #{tpu_custom_call.1} parent=5 // pred_region
        // Predicated region
        $region41: #{tpu_custom_call.1} parent=39 // pred_check
          %p231 = pneg %p36
        $region42: #{tpu_custom_call.1} parent=39 // pred_check_branch
          %233 = sbr.rel (%p231) target = $region44
        $region43: #{tpu_custom_call.1} parent=39 // pred_region
          %s234 = smul.u32 64, %s16
          %p235 = scmp.lt.s32.totalorder %s234, 127
          %s236 = scalar_select %p235, %s234, 127
          %s237 = smul.addr %s236, 8
          %s238 = scalar_lea.vmem %s0, %s237
          %s239 = smul.u32 64, %s16
        $region44: #{tpu_custom_call.1} parent=39 // pred_fallthru
          _
      $region40: #{tpu_custom_call.1} parent=5 // pred_fallthru
        _
      %p240 = scmp.le.s32.totalorder 1, %s16
      %p241 = scmp.lt.s32.totalorder %s16, 3
      %p242 = pnand %p240, %p241
      %p243 = pneg %p242
      // Predicated region
      $region45: #{tpu_custom_call.1} parent=5 // pred_check
        _
      $region46: #{tpu_custom_call.1} parent=5 // pred_check_branch
        %245 = sbr.rel (%p242) target = $region48
      $region47: #{tpu_custom_call.1} parent=5 // pred_region
        %s246 = ssub.s32 %s16, 1
        %s247 = smul.u32 64, %s21
        %p248 = scmp.lt.s32.totalorder %s247, 127
        %s249 = scalar_select %p248, %s247, 127
        %s250 = smul.addr %s249, 8
        %s251 = scalar_lea.vmem %s0, %s250
        %p252 = pneg %p42
        %p253 = pneg %p39
        %p254 = pneg %p63
        %p255 = pneg %p60
        %p256 = pneg %p84
        %p257 = pneg %p81
        %p258 = pneg %p105
        %p259 = pneg %p102
        %p260 = pneg %p126
        %p261 = pneg %p123
        %p262 = pneg %p147
        %p263 = pneg %p144
        %p264 = pneg %p168
        %p265 = pneg %p165
        %p266 = pneg %p194
        %p267 = pneg %p191
        %s268 = sand.u32 %s181, 1
        %s269 = scalar_lea.sflag [#allocation3], %s268
        %s270 = sand.u32 %s181, 1
        %s271 = smul.addr %s270, 512
        %s272 = scalar_lea.vmem [#allocation2], %s271
        %s273 = smul.u32 64, %s21
        %p274 = scmp.lt.s32.totalorder %s273, 127
        %s275 = scalar_select %p274, %s273, 127
        %s276 = smul.addr %s275, 8
        %s277 = scalar_lea.vmem %s0, %s276
        %s278 = smul.u32 64, %s21
        %s279 = smul.u32 64, %s21
        %v280 = vld [vmem:[%s277] sm:$0xff]
        %v281 = vld [vmem:[%s277 + $0x8] sm:$0xff]
        %v282 = vld [vmem:[%s277 + $0x10] sm:$0xff]
        %v283 = vld [vmem:[%s277 + $0x18] sm:$0xff]
        %v284 = vld [vmem:[%s277 + $0x20] sm:$0xff]
        %v285 = vld [vmem:[%s277 + $0x28] sm:$0xff]
        %v286 = vld [vmem:[%s277 + $0x30] sm:$0xff]
        %v287 = vld [vmem:[%s277 + $0x38] sm:$0xff]
        %v288 = vld [vmem:[%s277 + $0x40] sm:$0xff]
        %v289 = vld [vmem:[%s277 + $0x48] sm:$0xff]
        %v290 = vld [vmem:[%s277 + $0x50] sm:$0xff]
        %v291 = vld [vmem:[%s277 + $0x58] sm:$0xff]
        %v292 = vld [vmem:[%s277 + $0x60] sm:$0xff]
        %v293 = vld [vmem:[%s277 + $0x68] sm:$0xff]
        %v294 = vld [vmem:[%s277 + $0x70] sm:$0xff]
        %v295 = vld [vmem:[%s277 + $0x78] sm:$0xff]
        %v296 = vld [vmem:[%s277 + $0x80] sm:$0xff]
        %v297 = vld [vmem:[%s277 + $0x88] sm:$0xff]
        %v298 = vld [vmem:[%s277 + $0x90] sm:$0xff]
        %v299 = vld [vmem:[%s277 + $0x98] sm:$0xff]
        %v300 = vld [vmem:[%s277 + $0xa0] sm:$0xff]
        %v301 = vld [vmem:[%s277 + $0xa8] sm:$0xff]
        %v302 = vld [vmem:[%s277 + $0xb0] sm:$0xff]
        %v303 = vld [vmem:[%s277 + $0xb8] sm:$0xff]
        %v304 = vld [vmem:[%s277 + $0xc0] sm:$0xff]
        %v305 = vld [vmem:[%s277 + $0xc8] sm:$0xff]
        %v306 = vld [vmem:[%s277 + $0xd0] sm:$0xff]
        %v307 = vld [vmem:[%s277 + $0xd8] sm:$0xff]
        %v308 = vld [vmem:[%s277 + $0xe0] sm:$0xff]
        %v309 = vld [vmem:[%s277 + $0xe8] sm:$0xff]
        %v310 = vld [vmem:[%s277 + $0xf0] sm:$0xff]
        %v311 = vld [vmem:[%s277 + $0xf8] sm:$0xff]
        %v312 = vld [vmem:[%s277 + $0x100] sm:$0xff]
        %v313 = vld [vmem:[%s277 + $0x108] sm:$0xff]
        %v314 = vld [vmem:[%s277 + $0x110] sm:$0xff]
        %v315 = vld [vmem:[%s277 + $0x118] sm:$0xff]
        %v316 = vld [vmem:[%s277 + $0x120] sm:$0xff]
        %v317 = vld [vmem:[%s277 + $0x128] sm:$0xff]
        %v318 = vld [vmem:[%s277 + $0x130] sm:$0xff]
        %v319 = vld [vmem:[%s277 + $0x138] sm:$0xff]
        %v320 = vld [vmem:[%s277 + $0x140] sm:$0xff]
        %v321 = vld [vmem:[%s277 + $0x148] sm:$0xff]
        %v322 = vld [vmem:[%s277 + $0x150] sm:$0xff]
        %v323 = vld [vmem:[%s277 + $0x158] sm:$0xff]
        %v324 = vld [vmem:[%s277 + $0x160] sm:$0xff]
        %v325 = vld [vmem:[%s277 + $0x168] sm:$0xff]
        %v326 = vld [vmem:[%s277 + $0x170] sm:$0xff]
        %v327 = vld [vmem:[%s277 + $0x178] sm:$0xff]
        %v328 = vld [vmem:[%s277 + $0x180] sm:$0xff]
        %v329 = vld [vmem:[%s277 + $0x188] sm:$0xff]
        %v330 = vld [vmem:[%s277 + $0x190] sm:$0xff]
        %v331 = vld [vmem:[%s277 + $0x198] sm:$0xff]
        %v332 = vld [vmem:[%s277 + $0x1a0] sm:$0xff]
        %v333 = vld [vmem:[%s277 + $0x1a8] sm:$0xff]
        %v334 = vld [vmem:[%s277 + $0x1b0] sm:$0xff]
        %v335 = vld [vmem:[%s277 + $0x1b8] sm:$0xff]
        %v336 = vld [vmem:[%s277 + $0x1c0] sm:$0xff]
        %v337 = vld [vmem:[%s277 + $0x1c8] sm:$0xff]
        %v338 = vld [vmem:[%s277 + $0x1d0] sm:$0xff]
        %v339 = vld [vmem:[%s277 + $0x1d8] sm:$0xff]
        %v340 = vld [vmem:[%s277 + $0x1e0] sm:$0xff]
        %v341 = vld [vmem:[%s277 + $0x1e8] sm:$0xff]
        %v342 = vld [vmem:[%s277 + $0x1f0] sm:$0xff]
        %v343 = vld [vmem:[%s277 + $0x1f8] sm:$0xff]
        %v344 = vld [vmem:[%s1] sm:$0xff]
        %v345 = vld [vmem:[%s1 + $0x8] sm:$0xff]
        %v346 = vld [vmem:[%s1 + $0x10] sm:$0xff]
        %v347 = vld [vmem:[%s1 + $0x18] sm:$0xff]
        %v348 = vld [vmem:[%s1 + $0x20] sm:$0xff]
        %v349 = vld [vmem:[%s1 + $0x28] sm:$0xff]
        %v350 = vld [vmem:[%s1 + $0x30] sm:$0xff]
        %v351 = vld [vmem:[%s1 + $0x38] sm:$0xff]
        %v352 = vld [vmem:[%s2] sm:$0x3]
        %v354 = vlaneseq
        %v355 = vshrl.u32 %v354, 7
        %v356 = vsub.s32 0, %v355
        %v357 = vrot.slane %v352, %v356
        %v358 = vlaneseq
        %v359 = vshrl.u32 %v358, 7
        %v360 = vsub.s32 1, %v359
        %v361 = vrot.slane %v352, %v360
        %vm364 = vcmask 261120
        %v366 = vsel %vm364, %v280, 0
        %v369 = vsel %vm364, %v281, 0
        %v372 = vsel %vm364, %v282, 0
        %v375 = vsel %vm364, %v283, 0
        %v378 = vsel %vm364, %v284, 0
        %v381 = vsel %vm364, %v285, 0
        %v384 = vsel %vm364, %v286, 0
        %v387 = vsel %vm364, %v287, 0
        %v390 = vsel %vm364, %v288, 0
        %v393 = vsel %vm364, %v289, 0
        %v396 = vsel %vm364, %v290, 0
        %v399 = vsel %vm364, %v291, 0
        %v402 = vsel %vm364, %v292, 0
        %v405 = vsel %vm364, %v293, 0
        %v408 = vsel %vm364, %v294, 0
        %v411 = vsel %vm364, %v295, 0
        %v414 = vsel %vm364, %v296, 0
        %v417 = vsel %vm364, %v297, 0
        %v420 = vsel %vm364, %v298, 0
        %v423 = vsel %vm364, %v299, 0
        %v426 = vsel %vm364, %v300, 0
        %v429 = vsel %vm364, %v301, 0
        %v432 = vsel %vm364, %v302, 0
        %v435 = vsel %vm364, %v303, 0
        %v438 = vsel %vm364, %v304, 0
        %v441 = vsel %vm364, %v305, 0
        %v444 = vsel %vm364, %v306, 0
        %v447 = vsel %vm364, %v307, 0
        %v450 = vsel %vm364, %v308, 0
        %v453 = vsel %vm364, %v309, 0
        %v456 = vsel %vm364, %v310, 0
        %v459 = vsel %vm364, %v311, 0
        %v462 = vsel %vm364, %v312, 0
        %v465 = vsel %vm364, %v313, 0
        %v468 = vsel %vm364, %v314, 0
        %v471 = vsel %vm364, %v315, 0
        %v474 = vsel %vm364, %v316, 0
        %v477 = vsel %vm364, %v317, 0
        %v480 = vsel %vm364, %v318, 0
        %v483 = vsel %vm364, %v319, 0
        %v486 = vsel %vm364, %v320, 0
        %v489 = vsel %vm364, %v321, 0
        %v492 = vsel %vm364, %v322, 0
        %v495 = vsel %vm364, %v323, 0
        %v498 = vsel %vm364, %v324, 0
        %v501 = vsel %vm364, %v325, 0
        %v504 = vsel %vm364, %v326, 0
        %v507 = vsel %vm364, %v327, 0
        %v510 = vsel %vm364, %v328, 0
        %v513 = vsel %vm364, %v329, 0
        %v516 = vsel %vm364, %v330, 0
        %v519 = vsel %vm364, %v331, 0
        %v522 = vsel %vm364, %v332, 0
        %v525 = vsel %vm364, %v333, 0
        %v528 = vsel %vm364, %v334, 0
        %v531 = vsel %vm364, %v335, 0
        %v534 = vsel %vm364, %v336, 0
        %v537 = vsel %vm364, %v337, 0
        %v540 = vsel %vm364, %v338, 0
        %v543 = vsel %vm364, %v339, 0
        %v546 = vsel %vm364, %v340, 0
        %v549 = vsel %vm364, %v341, 0
        %v552 = vsel %vm364, %v342, 0
        %v555 = vsel %vm364, %v343, 0
        %557 = vmatprep.subr.mxu0 0.0
        %558 = vmatpush1.msra.mxu0 0.0
        %559 = vmatprep.subr.mxu0 0.0
        %560 = vmatpush1.msra.mxu0 0.0
        %561 = vmatprep.subr.mxu0 0.0
        %562 = vmatpush1.msra.mxu0 0.0
        %563 = vmatprep.subr.mxu0 0.0
        %564 = vmatpush1.msra.mxu0 0.0
        %565 = vmatprep.subr.mxu0 0.0
        %566 = vmatpush1.msra.mxu0 0.0
        %567 = vmatprep.subr.mxu0 0.0
        %568 = vmatpush1.msra.mxu0 0.0
        %569 = vmatprep.subr.mxu0 0.0
        %570 = vmatpush1.msra.mxu0 0.0
        %571 = vmatprep.subr.mxu0 0.0
        %572 = vmatpush1.msra.mxu0 0.0
        %573 = vmatprep.subr.mxu0 0.0
        %574 = vmatpush1.msra.mxu0 0.0
        %575 = vmatprep.subr.mxu0 0.0
        %576 = vmatpush1.msra.mxu0 0.0
        %577 = vmatprep.subr.mxu0 0.0
        %578 = vmatpush1.msra.mxu0 0.0
        %579 = vmatprep.subr.mxu0 0.0
        %580 = vmatpush1.msra.mxu0 0.0
        %581 = vmatprep.subr.mxu0 %v351
        %582 = vmatpush1.msra.mxu0 %v350
        %583 = vmatprep.subr.mxu0 %v349
        %584 = vmatpush1.msra.mxu0 %v348
        %585 = vmatprep.subr.mxu0 %v347
        %586 = vmatpush1.msra.mxu0 %v346
        %587 = vmatprep.subr.mxu0 %v345
        %588 = vmatpush1.msra.mxu0 %v344
        %589 = vmatprep.subr.mxu0 0.0
        %590 = vmatpush2.msra.mxu0 0.0
        %591 = vmatprep.subr.mxu0 0.0
        %592 = vmatpush2.msra.mxu0 0.0
        %593 = vmatprep.subr.mxu0 0.0
        %594 = vmatpush2.msra.mxu0 0.0
        %595 = vmatprep.subr.mxu0 0.0
        %596 = vmatpush2.msra.mxu0 0.0
        %597 = vmatprep.subr.mxu0 0.0
        %598 = vmatpush2.msra.mxu0 0.0
        %599 = vmatprep.subr.mxu0 0.0
        %600 = vmatpush2.msra.mxu0 0.0
        %601 = vmatprep.subr.mxu0 0.0
        %602 = vmatpush2.msra.mxu0 0.0
        %603 = vmatprep.subr.mxu0 0.0
        %604 = vmatpush2.msra.mxu0 0.0
        %605 = vmatprep.subr.mxu0 0.0
        %606 = vmatpush2.msra.mxu0 0.0
        %607 = vmatprep.subr.mxu0 0.0
        %608 = vmatpush2.msra.mxu0 0.0
        %609 = vmatprep.subr.mxu0 0.0
        %610 = vmatpush2.msra.mxu0 0.0
        %611 = vmatprep.subr.mxu0 0.0
        %612 = vmatpush2.msra.mxu0 0.0
        %613 = vmatprep.subr.mxu0 0.0
        %614 = vmatpush2.msra.mxu0 0.0
        %615 = vmatprep.subr.mxu0 0.0
        %616 = vmatpush2.msra.mxu0 0.0
        %617 = vmatprep.subr.mxu0 0.0
        %618 = vmatpush2.msra.mxu0 0.0
        %619 = vmatprep.subr.mxu0 0.0
        %620 = vmatpush2.msra.mxu0 0.0
        %621 = vmatprep.mubr.f32.mxu0 0.0
        %622 = vmatmul.mubr.f32.gmra.mxu0 %v366
        %v623 = vpop.f32.mrf.mxu0
        %v624 = vadd.f32 %v357, %v623
        %v625 = vpop.f32.mrf.mxu0
        %v626 = vadd.f32 %v361, %v625
        %627 = vmatprep.mubr.f32.mxu0 0.0
        %628 = vmatmul.mubr.f32.gmra.mxu0 %v369
        %v629 = vpop.f32.mrf.mxu0
        %v630 = vadd.f32 %v357, %v629
        %v631 = vpop.f32.mrf.mxu0
        %v632 = vadd.f32 %v361, %v631
        %633 = vmatprep.mubr.f32.mxu0 0.0
        %634 = vmatmul.mubr.f32.gmra.mxu0 %v372
        %v635 = vpop.f32.mrf.mxu0
        %v636 = vadd.f32 %v357, %v635
        %v637 = vpop.f32.mrf.mxu0
        %v638 = vadd.f32 %v361, %v637
        %639 = vmatprep.mubr.f32.mxu0 0.0
        %640 = vmatmul.mubr.f32.gmra.mxu0 %v375
        %v641 = vpop.f32.mrf.mxu0
        %v642 = vadd.f32 %v357, %v641
        %v643 = vpop.f32.mrf.mxu0
        %v644 = vadd.f32 %v361, %v643
        %645 = vmatprep.mubr.f32.mxu0 0.0
        %646 = vmatmul.mubr.f32.gmra.mxu0 %v378
        %v647 = vpop.f32.mrf.mxu0
        %v648 = vadd.f32 %v357, %v647
        %v649 = vpop.f32.mrf.mxu0
        %v650 = vadd.f32 %v361, %v649
        %651 = vmatprep.mubr.f32.mxu0 0.0
        %652 = vmatmul.mubr.f32.gmra.mxu0 %v381
        %v653 = vpop.f32.mrf.mxu0
        %v654 = vadd.f32 %v357, %v653
        %v655 = vpop.f32.mrf.mxu0
        %v656 = vadd.f32 %v361, %v655
        %657 = vmatprep.mubr.f32.mxu0 0.0
        %658 = vmatmul.mubr.f32.gmra.mxu0 %v384
        %v659 = vpop.f32.mrf.mxu0
        %v660 = vadd.f32 %v357, %v659
        %v661 = vpop.f32.mrf.mxu0
        %v662 = vadd.f32 %v361, %v661
        %663 = vmatprep.mubr.f32.mxu0 0.0
        %664 = vmatmul.mubr.f32.gmra.mxu0 %v387
        %v665 = vpop.f32.mrf.mxu0
        %v666 = vadd.f32 %v357, %v665
        %v667 = vpop.f32.mrf.mxu0
        %v668 = vadd.f32 %v361, %v667
        %669 = vmatprep.mubr.f32.mxu0 0.0
        %670 = vmatmul.mubr.f32.gmra.mxu0 %v390
        %v671 = vpop.f32.mrf.mxu0
        %v672 = vadd.f32 %v357, %v671
        %v673 = vpop.f32.mrf.mxu0
        %v674 = vadd.f32 %v361, %v673
        %675 = vmatprep.mubr.f32.mxu0 0.0
        %676 = vmatmul.mubr.f32.gmra.mxu0 %v393
        %v677 = vpop.f32.mrf.mxu0
        %v678 = vadd.f32 %v357, %v677
        %v679 = vpop.f32.mrf.mxu0
        %v680 = vadd.f32 %v361, %v679
        %681 = vmatprep.mubr.f32.mxu0 0.0
        %682 = vmatmul.mubr.f32.gmra.mxu0 %v396
        %v683 = vpop.f32.mrf.mxu0
        %v684 = vadd.f32 %v357, %v683
        %v685 = vpop.f32.mrf.mxu0
        %v686 = vadd.f32 %v361, %v685
        %687 = vmatprep.mubr.f32.mxu0 0.0
        %688 = vmatmul.mubr.f32.gmra.mxu0 %v399
        %v689 = vpop.f32.mrf.mxu0
        %v690 = vadd.f32 %v357, %v689
        %v691 = vpop.f32.mrf.mxu0
        %v692 = vadd.f32 %v361, %v691
        %693 = vmatprep.mubr.f32.mxu0 0.0
        %694 = vmatmul.mubr.f32.gmra.mxu0 %v402
        %v695 = vpop.f32.mrf.mxu0
        %v696 = vadd.f32 %v357, %v695
        %v697 = vpop.f32.mrf.mxu0
        %v698 = vadd.f32 %v361, %v697
        %699 = vmatprep.mubr.f32.mxu0 0.0
        %700 = vmatmul.mubr.f32.gmra.mxu0 %v405
        %v701 = vpop.f32.mrf.mxu0
        %v702 = vadd.f32 %v357, %v701
        %v703 = vpop.f32.mrf.mxu0
        %v704 = vadd.f32 %v361, %v703
        %705 = vmatprep.mubr.f32.mxu0 0.0
        %706 = vmatmul.mubr.f32.gmra.mxu0 %v408
        %v707 = vpop.f32.mrf.mxu0
        %v708 = vadd.f32 %v357, %v707
        %v709 = vpop.f32.mrf.mxu0
        %v710 = vadd.f32 %v361, %v709
        %711 = vmatprep.mubr.f32.mxu0 0.0
        %712 = vmatmul.mubr.f32.gmra.mxu0 %v411
        %v713 = vpop.f32.mrf.mxu0
        %v714 = vadd.f32 %v357, %v713
        %v715 = vpop.f32.mrf.mxu0
        %v716 = vadd.f32 %v361, %v715
        %717 = vmatprep.mubr.f32.mxu0 0.0
        %718 = vmatmul.mubr.f32.gmra.mxu0 %v414
        %v719 = vpop.f32.mrf.mxu0
        %v720 = vadd.f32 %v357, %v719
        %v721 = vpop.f32.mrf.mxu0
        %v722 = vadd.f32 %v361, %v721
        %723 = vmatprep.mubr.f32.mxu0 0.0
        %724 = vmatmul.mubr.f32.gmra.mxu0 %v417
        %v725 = vpop.f32.mrf.mxu0
        %v726 = vadd.f32 %v357, %v725
        %v727 = vpop.f32.mrf.mxu0
        %v728 = vadd.f32 %v361, %v727
        %729 = vmatprep.mubr.f32.mxu0 0.0
        %730 = vmatmul.mubr.f32.gmra.mxu0 %v420
        %v731 = vpop.f32.mrf.mxu0
        %v732 = vadd.f32 %v357, %v731
        %v733 = vpop.f32.mrf.mxu0
        %v734 = vadd.f32 %v361, %v733
        %735 = vmatprep.mubr.f32.mxu0 0.0
        %736 = vmatmul.mubr.f32.gmra.mxu0 %v423
        %v737 = vpop.f32.mrf.mxu0
        %v738 = vadd.f32 %v357, %v737
        %v739 = vpop.f32.mrf.mxu0
        %v740 = vadd.f32 %v361, %v739
        %741 = vmatprep.mubr.f32.mxu0 0.0
        %742 = vmatmul.mubr.f32.gmra.mxu0 %v426
        %v743 = vpop.f32.mrf.mxu0
        %v744 = vadd.f32 %v357, %v743
        %v745 = vpop.f32.mrf.mxu0
        %v746 = vadd.f32 %v361, %v745
        %747 = vmatprep.mubr.f32.mxu0 0.0
        %748 = vmatmul.mubr.f32.gmra.mxu0 %v429
        %v749 = vpop.f32.mrf.mxu0
        %v750 = vadd.f32 %v357, %v749
        %v751 = vpop.f32.mrf.mxu0
        %v752 = vadd.f32 %v361, %v751
        %753 = vmatprep.mubr.f32.mxu0 0.0
        %754 = vmatmul.mubr.f32.gmra.mxu0 %v432
        %v755 = vpop.f32.mrf.mxu0
        %v756 = vadd.f32 %v357, %v755
        %v757 = vpop.f32.mrf.mxu0
        %v758 = vadd.f32 %v361, %v757
        %759 = vmatprep.mubr.f32.mxu0 0.0
        %760 = vmatmul.mubr.f32.gmra.mxu0 %v435
        %v761 = vpop.f32.mrf.mxu0
        %v762 = vadd.f32 %v357, %v761
        %v763 = vpop.f32.mrf.mxu0
        %v764 = vadd.f32 %v361, %v763
        %765 = vmatprep.mubr.f32.mxu0 0.0
        %766 = vmatmul.mubr.f32.gmra.mxu0 %v438
        %v767 = vpop.f32.mrf.mxu0
        %v768 = vadd.f32 %v357, %v767
        %v769 = vpop.f32.mrf.mxu0
        %v770 = vadd.f32 %v361, %v769
        %771 = vmatprep.mubr.f32.mxu0 0.0
        %772 = vmatmul.mubr.f32.gmra.mxu0 %v441
        %v773 = vpop.f32.mrf.mxu0
        %v774 = vadd.f32 %v357, %v773
        %v775 = vpop.f32.mrf.mxu0
        %v776 = vadd.f32 %v361, %v775
        %777 = vmatprep.mubr.f32.mxu0 0.0
        %778 = vmatmul.mubr.f32.gmra.mxu0 %v444
        %v779 = vpop.f32.mrf.mxu0
        %v780 = vadd.f32 %v357, %v779
        %v781 = vpop.f32.mrf.mxu0
        %v782 = vadd.f32 %v361, %v781
        %783 = vmatprep.mubr.f32.mxu0 0.0
        %784 = vmatmul.mubr.f32.gmra.mxu0 %v447
        %v785 = vpop.f32.mrf.mxu0
        %v786 = vadd.f32 %v357, %v785
        %v787 = vpop.f32.mrf.mxu0
        %v788 = vadd.f32 %v361, %v787
        %789 = vmatprep.mubr.f32.mxu0 0.0
        %790 = vmatmul.mubr.f32.gmra.mxu0 %v450
        %v791 = vpop.f32.mrf.mxu0
        %v792 = vadd.f32 %v357, %v791
        %v793 = vpop.f32.mrf.mxu0
        %v794 = vadd.f32 %v361, %v793
        %795 = vmatprep.mubr.f32.mxu0 0.0
        %796 = vmatmul.mubr.f32.gmra.mxu0 %v453
        %v797 = vpop.f32.mrf.mxu0
        %v798 = vadd.f32 %v357, %v797
        %v799 = vpop.f32.mrf.mxu0
        %v800 = vadd.f32 %v361, %v799
        %801 = vmatprep.mubr.f32.mxu0 0.0
        %802 = vmatmul.mubr.f32.gmra.mxu0 %v456
        %v803 = vpop.f32.mrf.mxu0
        %v804 = vadd.f32 %v357, %v803
        %v805 = vpop.f32.mrf.mxu0
        %v806 = vadd.f32 %v361, %v805
        %807 = vmatprep.mubr.f32.mxu0 0.0
        %808 = vmatmul.mubr.f32.gmra.mxu0 %v459
        %v809 = vpop.f32.mrf.mxu0
        %v810 = vadd.f32 %v357, %v809
        %v811 = vpop.f32.mrf.mxu0
        %v812 = vadd.f32 %v361, %v811
        %813 = vmatprep.mubr.f32.mxu0 0.0
        %814 = vmatmul.mubr.f32.gmra.mxu0 %v462
        %v815 = vpop.f32.mrf.mxu0
        %v816 = vadd.f32 %v357, %v815
        %v817 = vpop.f32.mrf.mxu0
        %v818 = vadd.f32 %v361, %v817
        %819 = vmatprep.mubr.f32.mxu0 0.0
        %820 = vmatmul.mubr.f32.gmra.mxu0 %v465
        %v821 = vpop.f32.mrf.mxu0
        %v822 = vadd.f32 %v357, %v821
        %v823 = vpop.f32.mrf.mxu0
        %v824 = vadd.f32 %v361, %v823
        %825 = vmatprep.mubr.f32.mxu0 0.0
        %826 = vmatmul.mubr.f32.gmra.mxu0 %v468
        %v827 = vpop.f32.mrf.mxu0
        %v828 = vadd.f32 %v357, %v827
        %v829 = vpop.f32.mrf.mxu0
        %v830 = vadd.f32 %v361, %v829
        %831 = vmatprep.mubr.f32.mxu0 0.0
        %832 = vmatmul.mubr.f32.gmra.mxu0 %v471
        %v833 = vpop.f32.mrf.mxu0
        %v834 = vadd.f32 %v357, %v833
        %v835 = vpop.f32.mrf.mxu0
        %v836 = vadd.f32 %v361, %v835
        %837 = vmatprep.mubr.f32.mxu0 0.0
        %838 = vmatmul.mubr.f32.gmra.mxu0 %v474
        %v839 = vpop.f32.mrf.mxu0
        %v840 = vadd.f32 %v357, %v839
        %v841 = vpop.f32.mrf.mxu0
        %v842 = vadd.f32 %v361, %v841
        %843 = vmatprep.mubr.f32.mxu0 0.0
        %844 = vmatmul.mubr.f32.gmra.mxu0 %v477
        %v845 = vpop.f32.mrf.mxu0
        %v846 = vadd.f32 %v357, %v845
        %v847 = vpop.f32.mrf.mxu0
        %v848 = vadd.f32 %v361, %v847
        %849 = vmatprep.mubr.f32.mxu0 0.0
        %850 = vmatmul.mubr.f32.gmra.mxu0 %v480
        %v851 = vpop.f32.mrf.mxu0
        %v852 = vadd.f32 %v357, %v851
        %v853 = vpop.f32.mrf.mxu0
        %v854 = vadd.f32 %v361, %v853
        %855 = vmatprep.mubr.f32.mxu0 0.0
        %856 = vmatmul.mubr.f32.gmra.mxu0 %v483
        %v857 = vpop.f32.mrf.mxu0
        %v858 = vadd.f32 %v357, %v857
        %v859 = vpop.f32.mrf.mxu0
        %v860 = vadd.f32 %v361, %v859
        %861 = vmatprep.mubr.f32.mxu0 0.0
        %862 = vmatmul.mubr.f32.gmra.mxu0 %v486
        %v863 = vpop.f32.mrf.mxu0
        %v864 = vadd.f32 %v357, %v863
        %v865 = vpop.f32.mrf.mxu0
        %v866 = vadd.f32 %v361, %v865
        %867 = vmatprep.mubr.f32.mxu0 0.0
        %868 = vmatmul.mubr.f32.gmra.mxu0 %v489
        %v869 = vpop.f32.mrf.mxu0
        %v870 = vadd.f32 %v357, %v869
        %v871 = vpop.f32.mrf.mxu0
        %v872 = vadd.f32 %v361, %v871
        %873 = vmatprep.mubr.f32.mxu0 0.0
        %874 = vmatmul.mubr.f32.gmra.mxu0 %v492
        %v875 = vpop.f32.mrf.mxu0
        %v876 = vadd.f32 %v357, %v875
        %v877 = vpop.f32.mrf.mxu0
        %v878 = vadd.f32 %v361, %v877
        %879 = vmatprep.mubr.f32.mxu0 0.0
        %880 = vmatmul.mubr.f32.gmra.mxu0 %v495
        %v881 = vpop.f32.mrf.mxu0
        %v882 = vadd.f32 %v357, %v881
        %v883 = vpop.f32.mrf.mxu0
        %v884 = vadd.f32 %v361, %v883
        %885 = vmatprep.mubr.f32.mxu0 0.0
        %886 = vmatmul.mubr.f32.gmra.mxu0 %v498
        %v887 = vpop.f32.mrf.mxu0
        %v888 = vadd.f32 %v357, %v887
        %v889 = vpop.f32.mrf.mxu0
        %v890 = vadd.f32 %v361, %v889
        %891 = vmatprep.mubr.f32.mxu0 0.0
        %892 = vmatmul.mubr.f32.gmra.mxu0 %v501
        %v893 = vpop.f32.mrf.mxu0
        %v894 = vadd.f32 %v357, %v893
        %v895 = vpop.f32.mrf.mxu0
        %v896 = vadd.f32 %v361, %v895
        %897 = vmatprep.mubr.f32.mxu0 0.0
        %898 = vmatmul.mubr.f32.gmra.mxu0 %v504
        %v899 = vpop.f32.mrf.mxu0
        %v900 = vadd.f32 %v357, %v899
        %v901 = vpop.f32.mrf.mxu0
        %v902 = vadd.f32 %v361, %v901
        %903 = vmatprep.mubr.f32.mxu0 0.0
        %904 = vmatmul.mubr.f32.gmra.mxu0 %v507
        %v905 = vpop.f32.mrf.mxu0
        %v906 = vadd.f32 %v357, %v905
        %v907 = vpop.f32.mrf.mxu0
        %v908 = vadd.f32 %v361, %v907
        %909 = vmatprep.mubr.f32.mxu0 0.0
        %910 = vmatmul.mubr.f32.gmra.mxu0 %v510
        %v911 = vpop.f32.mrf.mxu0
        %v912 = vadd.f32 %v357, %v911
        %v913 = vpop.f32.mrf.mxu0
        %v914 = vadd.f32 %v361, %v913
        %915 = vmatprep.mubr.f32.mxu0 0.0
        %916 = vmatmul.mubr.f32.gmra.mxu0 %v513
        %v917 = vpop.f32.mrf.mxu0
        %v918 = vadd.f32 %v357, %v917
        %v919 = vpop.f32.mrf.mxu0
        %v920 = vadd.f32 %v361, %v919
        %921 = vmatprep.mubr.f32.mxu0 0.0
        %922 = vmatmul.mubr.f32.gmra.mxu0 %v516
        %v923 = vpop.f32.mrf.mxu0
        %v924 = vadd.f32 %v357, %v923
        %v925 = vpop.f32.mrf.mxu0
        %v926 = vadd.f32 %v361, %v925
        %927 = vmatprep.mubr.f32.mxu0 0.0
        %928 = vmatmul.mubr.f32.gmra.mxu0 %v519
        %v929 = vpop.f32.mrf.mxu0
        %v930 = vadd.f32 %v357, %v929
        %v931 = vpop.f32.mrf.mxu0
        %v932 = vadd.f32 %v361, %v931
        %933 = vmatprep.mubr.f32.mxu0 0.0
        %934 = vmatmul.mubr.f32.gmra.mxu0 %v522
        %v935 = vpop.f32.mrf.mxu0
        %v936 = vadd.f32 %v357, %v935
        %v937 = vpop.f32.mrf.mxu0
        %v938 = vadd.f32 %v361, %v937
        %939 = vmatprep.mubr.f32.mxu0 0.0
        %940 = vmatmul.mubr.f32.gmra.mxu0 %v525
        %v941 = vpop.f32.mrf.mxu0
        %v942 = vadd.f32 %v357, %v941
        %v943 = vpop.f32.mrf.mxu0
        %v944 = vadd.f32 %v361, %v943
        %945 = vmatprep.mubr.f32.mxu0 0.0
        %946 = vmatmul.mubr.f32.gmra.mxu0 %v528
        %v947 = vpop.f32.mrf.mxu0
        %v948 = vadd.f32 %v357, %v947
        %v949 = vpop.f32.mrf.mxu0
        %v950 = vadd.f32 %v361, %v949
        %951 = vmatprep.mubr.f32.mxu0 0.0
        %952 = vmatmul.mubr.f32.gmra.mxu0 %v531
        %v953 = vpop.f32.mrf.mxu0
        %v954 = vadd.f32 %v357, %v953
        %v955 = vpop.f32.mrf.mxu0
        %v956 = vadd.f32 %v361, %v955
        %957 = vmatprep.mubr.f32.mxu0 0.0
        %958 = vmatmul.mubr.f32.gmra.mxu0 %v534
        %v959 = vpop.f32.mrf.mxu0
        %v960 = vadd.f32 %v357, %v959
        %v961 = vpop.f32.mrf.mxu0
        %v962 = vadd.f32 %v361, %v961
        %963 = vmatprep.mubr.f32.mxu0 0.0
        %964 = vmatmul.mubr.f32.gmra.mxu0 %v537
        %v965 = vpop.f32.mrf.mxu0
        %v966 = vadd.f32 %v357, %v965
        %v967 = vpop.f32.mrf.mxu0
        %v968 = vadd.f32 %v361, %v967
        %969 = vmatprep.mubr.f32.mxu0 0.0
        %970 = vmatmul.mubr.f32.gmra.mxu0 %v540
        %v971 = vpop.f32.mrf.mxu0
        %v972 = vadd.f32 %v357, %v971
        %v973 = vpop.f32.mrf.mxu0
        %v974 = vadd.f32 %v361, %v973
        %975 = vmatprep.mubr.f32.mxu0 0.0
        %976 = vmatmul.mubr.f32.gmra.mxu0 %v543
        %v977 = vpop.f32.mrf.mxu0
        %v978 = vadd.f32 %v357, %v977
        %v979 = vpop.f32.mrf.mxu0
        %v980 = vadd.f32 %v361, %v979
        %981 = vmatprep.mubr.f32.mxu0 0.0
        %982 = vmatmul.mubr.f32.gmra.mxu0 %v546
        %v983 = vpop.f32.mrf.mxu0
        %v984 = vadd.f32 %v357, %v983
        %v985 = vpop.f32.mrf.mxu0
        %v986 = vadd.f32 %v361, %v985
        %987 = vmatprep.mubr.f32.mxu0 0.0
        %988 = vmatmul.mubr.f32.gmra.mxu0 %v549
        %v989 = vpop.f32.mrf.mxu0
        %v990 = vadd.f32 %v357, %v989
        %v991 = vpop.f32.mrf.mxu0
        %v992 = vadd.f32 %v361, %v991
        %993 = vmatprep.mubr.f32.mxu0 0.0
        %994 = vmatmul.mubr.f32.gmra.mxu0 %v552
        %v995 = vpop.f32.mrf.mxu0
        %v996 = vadd.f32 %v357, %v995
        %v997 = vpop.f32.mrf.mxu0
        %v998 = vadd.f32 %v361, %v997
        %999 = vmatprep.mubr.f32.mxu0 0.0
        %1000 = vmatmul.mubr.f32.gmra.mxu0 %v555
        %v1001 = vpop.f32.mrf.mxu0
        %v1002 = vadd.f32 %v357, %v1001
        %v1003 = vpop.f32.mrf.mxu0
        %v1004 = vadd.f32 %v361, %v1003
        %1005 = vdwg.mxu0
        %v1006 = vmax.f32 %v624, 0.0
        %v1007 = vmax.f32 %v626, 0.0
        %v1008 = vmax.f32 %v630, 0.0
        %v1009 = vmax.f32 %v632, 0.0
        %v1010 = vmax.f32 %v636, 0.0
        %v1011 = vmax.f32 %v638, 0.0
        %v1012 = vmax.f32 %v642, 0.0
        %v1013 = vmax.f32 %v644, 0.0
        %v1014 = vmax.f32 %v648, 0.0
        %v1015 = vmax.f32 %v650, 0.0
        %v1016 = vmax.f32 %v654, 0.0
        %v1017 = vmax.f32 %v656, 0.0
        %v1018 = vmax.f32 %v660, 0.0
        %v1019 = vmax.f32 %v662, 0.0
        %v1020 = vmax.f32 %v666, 0.0
        %v1021 = vmax.f32 %v668, 0.0
        %v1022 = vmax.f32 %v672, 0.0
        %v1023 = vmax.f32 %v674, 0.0
        %v1024 = vmax.f32 %v678, 0.0
        %v1025 = vmax.f32 %v680, 0.0
        %v1026 = vmax.f32 %v684, 0.0
        %v1027 = vmax.f32 %v686, 0.0
        %v1028 = vmax.f32 %v690, 0.0
        %v1029 = vmax.f32 %v692, 0.0
        %v1030 = vmax.f32 %v696, 0.0
        %v1031 = vmax.f32 %v698, 0.0
        %v1032 = vmax.f32 %v702, 0.0
        %v1033 = vmax.f32 %v704, 0.0
        %v1034 = vmax.f32 %v708, 0.0
        %v1035 = vmax.f32 %v710, 0.0
        %v1036 = vmax.f32 %v714, 0.0
        %v1037 = vmax.f32 %v716, 0.0
        %v1038 = vmax.f32 %v720, 0.0
        %v1039 = vmax.f32 %v722, 0.0
        %v1040 = vmax.f32 %v726, 0.0
        %v1041 = vmax.f32 %v728, 0.0
        %v1042 = vmax.f32 %v732, 0.0
        %v1043 = vmax.f32 %v734, 0.0
        %v1044 = vmax.f32 %v738, 0.0
        %v1045 = vmax.f32 %v740, 0.0
        %v1046 = vmax.f32 %v744, 0.0
        %v1047 = vmax.f32 %v746, 0.0
        %v1048 = vmax.f32 %v750, 0.0
        %v1049 = vmax.f32 %v752, 0.0
        %v1050 = vmax.f32 %v756, 0.0
        %v1051 = vmax.f32 %v758, 0.0
        %v1052 = vmax.f32 %v762, 0.0
        %v1053 = vmax.f32 %v764, 0.0
        %v1054 = vmax.f32 %v768, 0.0
        %v1055 = vmax.f32 %v770, 0.0
        %v1056 = vmax.f32 %v774, 0.0
        %v1057 = vmax.f32 %v776, 0.0
        %v1058 = vmax.f32 %v780, 0.0
        %v1059 = vmax.f32 %v782, 0.0
        %v1060 = vmax.f32 %v786, 0.0
        %v1061 = vmax.f32 %v788, 0.0
        %v1062 = vmax.f32 %v792, 0.0
        %v1063 = vmax.f32 %v794, 0.0
        %v1064 = vmax.f32 %v798, 0.0
        %v1065 = vmax.f32 %v800, 0.0
        %v1066 = vmax.f32 %v804, 0.0
        %v1067 = vmax.f32 %v806, 0.0
        %v1068 = vmax.f32 %v810, 0.0
        %v1069 = vmax.f32 %v812, 0.0
        %v1070 = vmax.f32 %v816, 0.0
        %v1071 = vmax.f32 %v818, 0.0
        %v1072 = vmax.f32 %v822, 0.0
        %v1073 = vmax.f32 %v824, 0.0
        %v1074 = vmax.f32 %v828, 0.0
        %v1075 = vmax.f32 %v830, 0.0
        %v1076 = vmax.f32 %v834, 0.0
        %v1077 = vmax.f32 %v836, 0.0
        %v1078 = vmax.f32 %v840, 0.0
        %v1079 = vmax.f32 %v842, 0.0
        %v1080 = vmax.f32 %v846, 0.0
        %v1081 = vmax.f32 %v848, 0.0
        %v1082 = vmax.f32 %v852, 0.0
        %v1083 = vmax.f32 %v854, 0.0
        %v1084 = vmax.f32 %v858, 0.0
        %v1085 = vmax.f32 %v860, 0.0
        %v1086 = vmax.f32 %v864, 0.0
        %v1087 = vmax.f32 %v866, 0.0
        %v1088 = vmax.f32 %v870, 0.0
        %v1089 = vmax.f32 %v872, 0.0
        %v1090 = vmax.f32 %v876, 0.0
        %v1091 = vmax.f32 %v878, 0.0
        %v1092 = vmax.f32 %v882, 0.0
        %v1093 = vmax.f32 %v884, 0.0
        %v1094 = vmax.f32 %v888, 0.0
        %v1095 = vmax.f32 %v890, 0.0
        %v1096 = vmax.f32 %v894, 0.0
        %v1097 = vmax.f32 %v896, 0.0
        %v1098 = vmax.f32 %v900, 0.0
        %v1099 = vmax.f32 %v902, 0.0
        %v1100 = vmax.f32 %v906, 0.0
        %v1101 = vmax.f32 %v908, 0.0
        %v1102 = vmax.f32 %v912, 0.0
        %v1103 = vmax.f32 %v914, 0.0
        %v1104 = vmax.f32 %v918, 0.0
        %v1105 = vmax.f32 %v920, 0.0
        %v1106 = vmax.f32 %v924, 0.0
        %v1107 = vmax.f32 %v926, 0.0
        %v1108 = vmax.f32 %v930, 0.0
        %v1109 = vmax.f32 %v932, 0.0
        %v1110 = vmax.f32 %v936, 0.0
        %v1111 = vmax.f32 %v938, 0.0
        %v1112 = vmax.f32 %v942, 0.0
        %v1113 = vmax.f32 %v944, 0.0
        %v1114 = vmax.f32 %v948, 0.0
        %v1115 = vmax.f32 %v950, 0.0
        %v1116 = vmax.f32 %v954, 0.0
        %v1117 = vmax.f32 %v956, 0.0
        %v1118 = vmax.f32 %v960, 0.0
        %v1119 = vmax.f32 %v962, 0.0
        %v1120 = vmax.f32 %v966, 0.0
        %v1121 = vmax.f32 %v968, 0.0
        %v1122 = vmax.f32 %v972, 0.0
        %v1123 = vmax.f32 %v974, 0.0
        %v1124 = vmax.f32 %v978, 0.0
        %v1125 = vmax.f32 %v980, 0.0
        %v1126 = vmax.f32 %v984, 0.0
        %v1127 = vmax.f32 %v986, 0.0
        %v1128 = vmax.f32 %v990, 0.0
        %v1129 = vmax.f32 %v992, 0.0
        %v1130 = vmax.f32 %v996, 0.0
        %v1131 = vmax.f32 %v998, 0.0
        %v1132 = vmax.f32 %v1002, 0.0
        %v1133 = vmax.f32 %v1004, 0.0
        %v1134 = vld [vmem:[%s3] sm:$0xff]
        %v1135 = vld [vmem:[%s3 + $0x8] sm:$0xff]
        %v1136 = vld [vmem:[%s3 + $0x10] sm:$0xff]
        %v1137 = vld [vmem:[%s3 + $0x18] sm:$0xff]
        %v1138 = vld [vmem:[%s3 + $0x20] sm:$0xff]
        %v1139 = vld [vmem:[%s3 + $0x28] sm:$0xff]
        %v1140 = vld [vmem:[%s3 + $0x30] sm:$0xff]
        %v1141 = vld [vmem:[%s3 + $0x38] sm:$0xff]
        %v1142 = vld [vmem:[%s3 + $0x40] sm:$0xff]
        %v1143 = vld [vmem:[%s3 + $0x48] sm:$0xff]
        %v1144 = vld [vmem:[%s3 + $0x50] sm:$0xff]
        %v1145 = vld [vmem:[%s3 + $0x58] sm:$0xff]
        %v1146 = vld [vmem:[%s3 + $0x60] sm:$0xff]
        %v1147 = vld [vmem:[%s3 + $0x68] sm:$0xff]
        %v1148 = vld [vmem:[%s3 + $0x70] sm:$0xff]
        %v1149 = vld [vmem:[%s3 + $0x78] sm:$0xff]
        %v1150 = vld [vmem:[%s3 + $0x80] sm:$0xff]
        %v1151 = vld [vmem:[%s3 + $0x88] sm:$0xff]
        %v1152 = vld [vmem:[%s3 + $0x90] sm:$0xff]
        %v1153 = vld [vmem:[%s3 + $0x98] sm:$0xff]
        %v1154 = vld [vmem:[%s3 + $0xa0] sm:$0xff]
        %v1155 = vld [vmem:[%s3 + $0xa8] sm:$0xff]
        %v1156 = vld [vmem:[%s3 + $0xb0] sm:$0xff]
        %v1157 = vld [vmem:[%s3 + $0xb8] sm:$0xff]
        %v1158 = vld [vmem:[%s3 + $0xc0] sm:$0xff]
        %v1159 = vld [vmem:[%s3 + $0xc8] sm:$0xff]
        %v1160 = vld [vmem:[%s3 + $0xd0] sm:$0xff]
        %v1161 = vld [vmem:[%s3 + $0xd8] sm:$0xff]
        %v1162 = vld [vmem:[%s3 + $0xe0] sm:$0xff]
        %v1163 = vld [vmem:[%s3 + $0xe8] sm:$0xff]
        %v1164 = vld [vmem:[%s3 + $0xf0] sm:$0xff]
        %v1165 = vld [vmem:[%s3 + $0xf8] sm:$0xff]
        %v1166 = vld [vmem:[%s3 + $0x100] sm:$0xff]
        %v1167 = vld [vmem:[%s3 + $0x108] sm:$0xff]
        %v1168 = vld [vmem:[%s3 + $0x110] sm:$0xff]
        %v1169 = vld [vmem:[%s3 + $0x118] sm:$0xff]
        %v1170 = vld [vmem:[%s3 + $0x120] sm:$0xff]
        %v1171 = vld [vmem:[%s3 + $0x128] sm:$0xff]
        %v1172 = vld [vmem:[%s3 + $0x130] sm:$0xff]
        %v1173 = vld [vmem:[%s3 + $0x138] sm:$0xff]
        %v1174 = vld [vmem:[%s3 + $0x140] sm:$0xff]
        %v1175 = vld [vmem:[%s3 + $0x148] sm:$0xff]
        %v1176 = vld [vmem:[%s3 + $0x150] sm:$0xff]
        %v1177 = vld [vmem:[%s3 + $0x158] sm:$0xff]
        %v1178 = vld [vmem:[%s3 + $0x160] sm:$0xff]
        %v1179 = vld [vmem:[%s3 + $0x168] sm:$0xff]
        %v1180 = vld [vmem:[%s3 + $0x170] sm:$0xff]
        %v1181 = vld [vmem:[%s3 + $0x178] sm:$0xff]
        %v1182 = vld [vmem:[%s3 + $0x180] sm:$0xff]
        %v1183 = vld [vmem:[%s3 + $0x188] sm:$0xff]
        %v1184 = vld [vmem:[%s3 + $0x190] sm:$0xff]
        %v1185 = vld [vmem:[%s3 + $0x198] sm:$0xff]
        %v1186 = vld [vmem:[%s3 + $0x1a0] sm:$0xff]
        %v1187 = vld [vmem:[%s3 + $0x1a8] sm:$0xff]
        %v1188 = vld [vmem:[%s3 + $0x1b0] sm:$0xff]
        %v1189 = vld [vmem:[%s3 + $0x1b8] sm:$0xff]
        %v1190 = vld [vmem:[%s3 + $0x1c0] sm:$0xff]
        %v1191 = vld [vmem:[%s3 + $0x1c8] sm:$0xff]
        %v1192 = vld [vmem:[%s3 + $0x1d0] sm:$0xff]
        %v1193 = vld [vmem:[%s3 + $0x1d8] sm:$0xff]
        %v1194 = vld [vmem:[%s3 + $0x1e0] sm:$0xff]
        %v1195 = vld [vmem:[%s3 + $0x1e8] sm:$0xff]
        %v1196 = vld [vmem:[%s3 + $0x1f0] sm:$0xff]
        %v1197 = vld [vmem:[%s3 + $0x1f8] sm:$0xff]
        %v1198 = vld [vmem:[%s4] sm:$0x3]
        %v1200 = vlaneseq
        %v1201 = vshrl.u32 %v1200, 7
        %v1202 = vsub.s32 0, %v1201
        %v1203 = vrot.slane %v1198, %v1202
        %v1204 = vlaneseq
        %v1205 = vshrl.u32 %v1204, 7
        %v1206 = vsub.s32 1, %v1205
        %v1207 = vrot.slane %v1198, %v1206
        %1210 = vmatprep.subr.mxu0 %v1165
        %1211 = vmatpush1.msra.mxu0 %v1164
        %1212 = vmatprep.subr.mxu0 %v1163
        %1213 = vmatpush1.msra.mxu0 %v1162
        %1214 = vmatprep.subr.mxu0 %v1161
        %1215 = vmatpush1.msra.mxu0 %v1160
        %1216 = vmatprep.subr.mxu0 %v1159
        %1217 = vmatpush1.msra.mxu0 %v1158
        %1218 = vmatprep.subr.mxu0 %v1157
        %1219 = vmatpush1.msra.mxu0 %v1156
        %1220 = vmatprep.subr.mxu0 %v1155
        %1221 = vmatpush1.msra.mxu0 %v1154
        %1222 = vmatprep.subr.mxu0 %v1153
        %1223 = vmatpush1.msra.mxu0 %v1152
        %1224 = vmatprep.subr.mxu0 %v1151
        %1225 = vmatpush1.msra.mxu0 %v1150
        %1226 = vmatprep.subr.mxu0 %v1149
        %1227 = vmatpush1.msra.mxu0 %v1148
        %1228 = vmatprep.subr.mxu0 %v1147
        %1229 = vmatpush1.msra.mxu0 %v1146
        %1230 = vmatprep.subr.mxu0 %v1145
        %1231 = vmatpush1.msra.mxu0 %v1144
        %1232 = vmatprep.subr.mxu0 %v1143
        %1233 = vmatpush1.msra.mxu0 %v1142
        %1234 = vmatprep.subr.mxu0 %v1141
        %1235 = vmatpush1.msra.mxu0 %v1140
        %1236 = vmatprep.subr.mxu0 %v1139
        %1237 = vmatpush1.msra.mxu0 %v1138
        %1238 = vmatprep.subr.mxu0 %v1137
        %1239 = vmatpush1.msra.mxu0 %v1136
        %1240 = vmatprep.subr.mxu0 %v1135
        %1241 = vmatpush1.msra.mxu0 %v1134
        %1242 = vmatprep.subr.mxu0 %v1197
        %1243 = vmatpush2.msra.mxu0 %v1196
        %1244 = vmatprep.subr.mxu0 %v1195
        %1245 = vmatpush2.msra.mxu0 %v1194
        %1246 = vmatprep.subr.mxu0 %v1193
        %1247 = vmatpush2.msra.mxu0 %v1192
        %1248 = vmatprep.subr.mxu0 %v1191
        %1249 = vmatpush2.msra.mxu0 %v1190
        %1250 = vmatprep.subr.mxu0 %v1189
        %1251 = vmatpush2.msra.mxu0 %v1188
        %1252 = vmatprep.subr.mxu0 %v1187
        %1253 = vmatpush2.msra.mxu0 %v1186
        %1254 = vmatprep.subr.mxu0 %v1185
        %1255 = vmatpush2.msra.mxu0 %v1184
        %1256 = vmatprep.subr.mxu0 %v1183
        %1257 = vmatpush2.msra.mxu0 %v1182
        %1258 = vmatprep.subr.mxu0 %v1181
        %1259 = vmatpush2.msra.mxu0 %v1180
        %1260 = vmatprep.subr.mxu0 %v1179
        %1261 = vmatpush2.msra.mxu0 %v1178
        %1262 = vmatprep.subr.mxu0 %v1177
        %1263 = vmatpush2.msra.mxu0 %v1176
        %1264 = vmatprep.subr.mxu0 %v1175
        %1265 = vmatpush2.msra.mxu0 %v1174
        %1266 = vmatprep.subr.mxu0 %v1173
        %1267 = vmatpush2.msra.mxu0 %v1172
        %1268 = vmatprep.subr.mxu0 %v1171
        %1269 = vmatpush2.msra.mxu0 %v1170
        %1270 = vmatprep.subr.mxu0 %v1169
        %1271 = vmatpush2.msra.mxu0 %v1168
        %1272 = vmatprep.subr.mxu0 %v1167
        %1273 = vmatpush2.msra.mxu0 %v1166
        %1274 = vmatprep.mubr.f32.mxu0 %v1007
        %1275 = vmatmul.mubr.f32.gmra.mxu0 %v1006
        %v1276 = vpop.f32.mrf.mxu0
        %v1277 = vadd.f32 %v1203, %v1276
        %v1278 = vpop.f32.mrf.mxu0
        %v1279 = vadd.f32 %v1207, %v1278
        %1280 = vmatprep.mubr.f32.mxu0 %v1009
        %1281 = vmatmul.mubr.f32.gmra.mxu0 %v1008
        %v1282 = vpop.f32.mrf.mxu0
        %v1283 = vadd.f32 %v1203, %v1282
        %v1284 = vpop.f32.mrf.mxu0
        %v1285 = vadd.f32 %v1207, %v1284
        %1286 = vmatprep.mubr.f32.mxu0 %v1011
        %1287 = vmatmul.mubr.f32.gmra.mxu0 %v1010
        %v1288 = vpop.f32.mrf.mxu0
        %v1289 = vadd.f32 %v1203, %v1288
        %v1290 = vpop.f32.mrf.mxu0
        %v1291 = vadd.f32 %v1207, %v1290
        %1292 = vmatprep.mubr.f32.mxu0 %v1013
        %1293 = vmatmul.mubr.f32.gmra.mxu0 %v1012
        %v1294 = vpop.f32.mrf.mxu0
        %v1295 = vadd.f32 %v1203, %v1294
        %v1296 = vpop.f32.mrf.mxu0
        %v1297 = vadd.f32 %v1207, %v1296
        %1298 = vmatprep.mubr.f32.mxu0 %v1015
        %1299 = vmatmul.mubr.f32.gmra.mxu0 %v1014
        %v1300 = vpop.f32.mrf.mxu0
        %v1301 = vadd.f32 %v1203, %v1300
        %v1302 = vpop.f32.mrf.mxu0
        %v1303 = vadd.f32 %v1207, %v1302
        %1304 = vmatprep.mubr.f32.mxu0 %v1017
        %1305 = vmatmul.mubr.f32.gmra.mxu0 %v1016
        %v1306 = vpop.f32.mrf.mxu0
        %v1307 = vadd.f32 %v1203, %v1306
        %v1308 = vpop.f32.mrf.mxu0
        %v1309 = vadd.f32 %v1207, %v1308
        %1310 = vmatprep.mubr.f32.mxu0 %v1019
        %1311 = vmatmul.mubr.f32.gmra.mxu0 %v1018
        %v1312 = vpop.f32.mrf.mxu0
        %v1313 = vadd.f32 %v1203, %v1312
        %v1314 = vpop.f32.mrf.mxu0
        %v1315 = vadd.f32 %v1207, %v1314
        %1316 = vmatprep.mubr.f32.mxu0 %v1021
        %1317 = vmatmul.mubr.f32.gmra.mxu0 %v1020
        %v1318 = vpop.f32.mrf.mxu0
        %v1319 = vadd.f32 %v1203, %v1318
        %v1320 = vpop.f32.mrf.mxu0
        %v1321 = vadd.f32 %v1207, %v1320
        %1322 = vmatprep.mubr.f32.mxu0 %v1023
        %1323 = vmatmul.mubr.f32.gmra.mxu0 %v1022
        %v1324 = vpop.f32.mrf.mxu0
        %v1325 = vadd.f32 %v1203, %v1324
        %v1326 = vpop.f32.mrf.mxu0
        %v1327 = vadd.f32 %v1207, %v1326
        %1328 = vmatprep.mubr.f32.mxu0 %v1025
        %1329 = vmatmul.mubr.f32.gmra.mxu0 %v1024
        %v1330 = vpop.f32.mrf.mxu0
        %v1331 = vadd.f32 %v1203, %v1330
        %v1332 = vpop.f32.mrf.mxu0
        %v1333 = vadd.f32 %v1207, %v1332
        %1334 = vmatprep.mubr.f32.mxu0 %v1027
        %1335 = vmatmul.mubr.f32.gmra.mxu0 %v1026
        %v1336 = vpop.f32.mrf.mxu0
        %v1337 = vadd.f32 %v1203, %v1336
        %v1338 = vpop.f32.mrf.mxu0
        %v1339 = vadd.f32 %v1207, %v1338
        %1340 = vmatprep.mubr.f32.mxu0 %v1029
        %1341 = vmatmul.mubr.f32.gmra.mxu0 %v1028
        %v1342 = vpop.f32.mrf.mxu0
        %v1343 = vadd.f32 %v1203, %v1342
        %v1344 = vpop.f32.mrf.mxu0
        %v1345 = vadd.f32 %v1207, %v1344
        %1346 = vmatprep.mubr.f32.mxu0 %v1031
        %1347 = vmatmul.mubr.f32.gmra.mxu0 %v1030
        %v1348 = vpop.f32.mrf.mxu0
        %v1349 = vadd.f32 %v1203, %v1348
        %v1350 = vpop.f32.mrf.mxu0
        %v1351 = vadd.f32 %v1207, %v1350
        %1352 = vmatprep.mubr.f32.mxu0 %v1033
        %1353 = vmatmul.mubr.f32.gmra.mxu0 %v1032
        %v1354 = vpop.f32.mrf.mxu0
        %v1355 = vadd.f32 %v1203, %v1354
        %v1356 = vpop.f32.mrf.mxu0
        %v1357 = vadd.f32 %v1207, %v1356
        %1358 = vmatprep.mubr.f32.mxu0 %v1035
        %1359 = vmatmul.mubr.f32.gmra.mxu0 %v1034
        %v1360 = vpop.f32.mrf.mxu0
        %v1361 = vadd.f32 %v1203, %v1360
        %v1362 = vpop.f32.mrf.mxu0
        %v1363 = vadd.f32 %v1207, %v1362
        %1364 = vmatprep.mubr.f32.mxu0 %v1037
        %1365 = vmatmul.mubr.f32.gmra.mxu0 %v1036
        %v1366 = vpop.f32.mrf.mxu0
        %v1367 = vadd.f32 %v1203, %v1366
        %v1368 = vpop.f32.mrf.mxu0
        %v1369 = vadd.f32 %v1207, %v1368
        %1370 = vmatprep.mubr.f32.mxu0 %v1039
        %1371 = vmatmul.mubr.f32.gmra.mxu0 %v1038
        %v1372 = vpop.f32.mrf.mxu0
        %v1373 = vadd.f32 %v1203, %v1372
        %v1374 = vpop.f32.mrf.mxu0
        %v1375 = vadd.f32 %v1207, %v1374
        %1376 = vmatprep.mubr.f32.mxu0 %v1041
        %1377 = vmatmul.mubr.f32.gmra.mxu0 %v1040
        %v1378 = vpop.f32.mrf.mxu0
        %v1379 = vadd.f32 %v1203, %v1378
        %v1380 = vpop.f32.mrf.mxu0
        %v1381 = vadd.f32 %v1207, %v1380
        %1382 = vmatprep.mubr.f32.mxu0 %v1043
        %1383 = vmatmul.mubr.f32.gmra.mxu0 %v1042
        %v1384 = vpop.f32.mrf.mxu0
        %v1385 = vadd.f32 %v1203, %v1384
        %v1386 = vpop.f32.mrf.mxu0
        %v1387 = vadd.f32 %v1207, %v1386
        %1388 = vmatprep.mubr.f32.mxu0 %v1045
        %1389 = vmatmul.mubr.f32.gmra.mxu0 %v1044
        %v1390 = vpop.f32.mrf.mxu0
        %v1391 = vadd.f32 %v1203, %v1390
        %v1392 = vpop.f32.mrf.mxu0
        %v1393 = vadd.f32 %v1207, %v1392
        %1394 = vmatprep.mubr.f32.mxu0 %v1047
        %1395 = vmatmul.mubr.f32.gmra.mxu0 %v1046
        %v1396 = vpop.f32.mrf.mxu0
        %v1397 = vadd.f32 %v1203, %v1396
        %v1398 = vpop.f32.mrf.mxu0
        %v1399 = vadd.f32 %v1207, %v1398
        %1400 = vmatprep.mubr.f32.mxu0 %v1049
        %1401 = vmatmul.mubr.f32.gmra.mxu0 %v1048
        %v1402 = vpop.f32.mrf.mxu0
        %v1403 = vadd.f32 %v1203, %v1402
        %v1404 = vpop.f32.mrf.mxu0
        %v1405 = vadd.f32 %v1207, %v1404
        %1406 = vmatprep.mubr.f32.mxu0 %v1051
        %1407 = vmatmul.mubr.f32.gmra.mxu0 %v1050
        %v1408 = vpop.f32.mrf.mxu0
        %v1409 = vadd.f32 %v1203, %v1408
        %v1410 = vpop.f32.mrf.mxu0
        %v1411 = vadd.f32 %v1207, %v1410
        %1412 = vmatprep.mubr.f32.mxu0 %v1053
        %1413 = vmatmul.mubr.f32.gmra.mxu0 %v1052
        %v1414 = vpop.f32.mrf.mxu0
        %v1415 = vadd.f32 %v1203, %v1414
        %v1416 = vpop.f32.mrf.mxu0
        %v1417 = vadd.f32 %v1207, %v1416
        %1418 = vmatprep.mubr.f32.mxu0 %v1055
        %1419 = vmatmul.mubr.f32.gmra.mxu0 %v1054
        %v1420 = vpop.f32.mrf.mxu0
        %v1421 = vadd.f32 %v1203, %v1420
        %v1422 = vpop.f32.mrf.mxu0
        %v1423 = vadd.f32 %v1207, %v1422
        %1424 = vmatprep.mubr.f32.mxu0 %v1057
        %1425 = vmatmul.mubr.f32.gmra.mxu0 %v1056
        %v1426 = vpop.f32.mrf.mxu0
        %v1427 = vadd.f32 %v1203, %v1426
        %v1428 = vpop.f32.mrf.mxu0
        %v1429 = vadd.f32 %v1207, %v1428
        %1430 = vmatprep.mubr.f32.mxu0 %v1059
        %1431 = vmatmul.mubr.f32.gmra.mxu0 %v1058
        %v1432 = vpop.f32.mrf.mxu0
        %v1433 = vadd.f32 %v1203, %v1432
        %v1434 = vpop.f32.mrf.mxu0
        %v1435 = vadd.f32 %v1207, %v1434
        %1436 = vmatprep.mubr.f32.mxu0 %v1061
        %1437 = vmatmul.mubr.f32.gmra.mxu0 %v1060
        %v1438 = vpop.f32.mrf.mxu0
        %v1439 = vadd.f32 %v1203, %v1438
        %v1440 = vpop.f32.mrf.mxu0
        %v1441 = vadd.f32 %v1207, %v1440
        %1442 = vmatprep.mubr.f32.mxu0 %v1063
        %1443 = vmatmul.mubr.f32.gmra.mxu0 %v1062
        %v1444 = vpop.f32.mrf.mxu0
        %v1445 = vadd.f32 %v1203, %v1444
        %v1446 = vpop.f32.mrf.mxu0
        %v1447 = vadd.f32 %v1207, %v1446
        %1448 = vmatprep.mubr.f32.mxu0 %v1065
        %1449 = vmatmul.mubr.f32.gmra.mxu0 %v1064
        %v1450 = vpop.f32.mrf.mxu0
        %v1451 = vadd.f32 %v1203, %v1450
        %v1452 = vpop.f32.mrf.mxu0
        %v1453 = vadd.f32 %v1207, %v1452
        %1454 = vmatprep.mubr.f32.mxu0 %v1067
        %1455 = vmatmul.mubr.f32.gmra.mxu0 %v1066
        %v1456 = vpop.f32.mrf.mxu0
        %v1457 = vadd.f32 %v1203, %v1456
        %v1458 = vpop.f32.mrf.mxu0
        %v1459 = vadd.f32 %v1207, %v1458
        %1460 = vmatprep.mubr.f32.mxu0 %v1069
        %1461 = vmatmul.mubr.f32.gmra.mxu0 %v1068
        %v1462 = vpop.f32.mrf.mxu0
        %v1463 = vadd.f32 %v1203, %v1462
        %v1464 = vpop.f32.mrf.mxu0
        %v1465 = vadd.f32 %v1207, %v1464
        %1466 = vmatprep.mubr.f32.mxu0 %v1071
        %1467 = vmatmul.mubr.f32.gmra.mxu0 %v1070
        %v1468 = vpop.f32.mrf.mxu0
        %v1469 = vadd.f32 %v1203, %v1468
        %v1470 = vpop.f32.mrf.mxu0
        %v1471 = vadd.f32 %v1207, %v1470
        %1472 = vmatprep.mubr.f32.mxu0 %v1073
        %1473 = vmatmul.mubr.f32.gmra.mxu0 %v1072
        %v1474 = vpop.f32.mrf.mxu0
        %v1475 = vadd.f32 %v1203, %v1474
        %v1476 = vpop.f32.mrf.mxu0
        %v1477 = vadd.f32 %v1207, %v1476
        %1478 = vmatprep.mubr.f32.mxu0 %v1075
        %1479 = vmatmul.mubr.f32.gmra.mxu0 %v1074
        %v1480 = vpop.f32.mrf.mxu0
        %v1481 = vadd.f32 %v1203, %v1480
        %v1482 = vpop.f32.mrf.mxu0
        %v1483 = vadd.f32 %v1207, %v1482
        %1484 = vmatprep.mubr.f32.mxu0 %v1077
        %1485 = vmatmul.mubr.f32.gmra.mxu0 %v1076
        %v1486 = vpop.f32.mrf.mxu0
        %v1487 = vadd.f32 %v1203, %v1486
        %v1488 = vpop.f32.mrf.mxu0
        %v1489 = vadd.f32 %v1207, %v1488
        %1490 = vmatprep.mubr.f32.mxu0 %v1079
        %1491 = vmatmul.mubr.f32.gmra.mxu0 %v1078
        %v1492 = vpop.f32.mrf.mxu0
        %v1493 = vadd.f32 %v1203, %v1492
        %v1494 = vpop.f32.mrf.mxu0
        %v1495 = vadd.f32 %v1207, %v1494
        %1496 = vmatprep.mubr.f32.mxu0 %v1081
        %1497 = vmatmul.mubr.f32.gmra.mxu0 %v1080
        %v1498 = vpop.f32.mrf.mxu0
        %v1499 = vadd.f32 %v1203, %v1498
        %v1500 = vpop.f32.mrf.mxu0
        %v1501 = vadd.f32 %v1207, %v1500
        %1502 = vmatprep.mubr.f32.mxu0 %v1083
        %1503 = vmatmul.mubr.f32.gmra.mxu0 %v1082
        %v1504 = vpop.f32.mrf.mxu0
        %v1505 = vadd.f32 %v1203, %v1504
        %v1506 = vpop.f32.mrf.mxu0
        %v1507 = vadd.f32 %v1207, %v1506
        %1508 = vmatprep.mubr.f32.mxu0 %v1085
        %1509 = vmatmul.mubr.f32.gmra.mxu0 %v1084
        %v1510 = vpop.f32.mrf.mxu0
        %v1511 = vadd.f32 %v1203, %v1510
        %v1512 = vpop.f32.mrf.mxu0
        %v1513 = vadd.f32 %v1207, %v1512
        %1514 = vmatprep.mubr.f32.mxu0 %v1087
        %1515 = vmatmul.mubr.f32.gmra.mxu0 %v1086
        %v1516 = vpop.f32.mrf.mxu0
        %v1517 = vadd.f32 %v1203, %v1516
        %v1518 = vpop.f32.mrf.mxu0
        %v1519 = vadd.f32 %v1207, %v1518
        %1520 = vmatprep.mubr.f32.mxu0 %v1089
        %1521 = vmatmul.mubr.f32.gmra.mxu0 %v1088
        %v1522 = vpop.f32.mrf.mxu0
        %v1523 = vadd.f32 %v1203, %v1522
        %v1524 = vpop.f32.mrf.mxu0
        %v1525 = vadd.f32 %v1207, %v1524
        %1526 = vmatprep.mubr.f32.mxu0 %v1091
        %1527 = vmatmul.mubr.f32.gmra.mxu0 %v1090
        %v1528 = vpop.f32.mrf.mxu0
        %v1529 = vadd.f32 %v1203, %v1528
        %v1530 = vpop.f32.mrf.mxu0
        %v1531 = vadd.f32 %v1207, %v1530
        %1532 = vmatprep.mubr.f32.mxu0 %v1093
        %1533 = vmatmul.mubr.f32.gmra.mxu0 %v1092
        %v1534 = vpop.f32.mrf.mxu0
        %v1535 = vadd.f32 %v1203, %v1534
        %v1536 = vpop.f32.mrf.mxu0
        %v1537 = vadd.f32 %v1207, %v1536
        %1538 = vmatprep.mubr.f32.mxu0 %v1095
        %1539 = vmatmul.mubr.f32.gmra.mxu0 %v1094
        %v1540 = vpop.f32.mrf.mxu0
        %v1541 = vadd.f32 %v1203, %v1540
        %v1542 = vpop.f32.mrf.mxu0
        %v1543 = vadd.f32 %v1207, %v1542
        %1544 = vmatprep.mubr.f32.mxu0 %v1097
        %1545 = vmatmul.mubr.f32.gmra.mxu0 %v1096
        %v1546 = vpop.f32.mrf.mxu0
        %v1547 = vadd.f32 %v1203, %v1546
        %v1548 = vpop.f32.mrf.mxu0
        %v1549 = vadd.f32 %v1207, %v1548
        %1550 = vmatprep.mubr.f32.mxu0 %v1099
        %1551 = vmatmul.mubr.f32.gmra.mxu0 %v1098
        %v1552 = vpop.f32.mrf.mxu0
        %v1553 = vadd.f32 %v1203, %v1552
        %v1554 = vpop.f32.mrf.mxu0
        %v1555 = vadd.f32 %v1207, %v1554
        %1556 = vmatprep.mubr.f32.mxu0 %v1101
        %1557 = vmatmul.mubr.f32.gmra.mxu0 %v1100
        %v1558 = vpop.f32.mrf.mxu0
        %v1559 = vadd.f32 %v1203, %v1558
        %v1560 = vpop.f32.mrf.mxu0
        %v1561 = vadd.f32 %v1207, %v1560
        %1562 = vmatprep.mubr.f32.mxu0 %v1103
        %1563 = vmatmul.mubr.f32.gmra.mxu0 %v1102
        %v1564 = vpop.f32.mrf.mxu0
        %v1565 = vadd.f32 %v1203, %v1564
        %v1566 = vpop.f32.mrf.mxu0
        %v1567 = vadd.f32 %v1207, %v1566
        %1568 = vmatprep.mubr.f32.mxu0 %v1105
        %1569 = vmatmul.mubr.f32.gmra.mxu0 %v1104
        %v1570 = vpop.f32.mrf.mxu0
        %v1571 = vadd.f32 %v1203, %v1570
        %v1572 = vpop.f32.mrf.mxu0
        %v1573 = vadd.f32 %v1207, %v1572
        %1574 = vmatprep.mubr.f32.mxu0 %v1107
        %1575 = vmatmul.mubr.f32.gmra.mxu0 %v1106
        %v1576 = vpop.f32.mrf.mxu0
        %v1577 = vadd.f32 %v1203, %v1576
        %v1578 = vpop.f32.mrf.mxu0
        %v1579 = vadd.f32 %v1207, %v1578
        %1580 = vmatprep.mubr.f32.mxu0 %v1109
        %1581 = vmatmul.mubr.f32.gmra.mxu0 %v1108
        %v1582 = vpop.f32.mrf.mxu0
        %v1583 = vadd.f32 %v1203, %v1582
        %v1584 = vpop.f32.mrf.mxu0
        %v1585 = vadd.f32 %v1207, %v1584
        %1586 = vmatprep.mubr.f32.mxu0 %v1111
        %1587 = vmatmul.mubr.f32.gmra.mxu0 %v1110
        %v1588 = vpop.f32.mrf.mxu0
        %v1589 = vadd.f32 %v1203, %v1588
        %v1590 = vpop.f32.mrf.mxu0
        %v1591 = vadd.f32 %v1207, %v1590
        %1592 = vmatprep.mubr.f32.mxu0 %v1113
        %1593 = vmatmul.mubr.f32.gmra.mxu0 %v1112
        %v1594 = vpop.f32.mrf.mxu0
        %v1595 = vadd.f32 %v1203, %v1594
        %v1596 = vpop.f32.mrf.mxu0
        %v1597 = vadd.f32 %v1207, %v1596
        %1598 = vmatprep.mubr.f32.mxu0 %v1115
        %1599 = vmatmul.mubr.f32.gmra.mxu0 %v1114
        %v1600 = vpop.f32.mrf.mxu0
        %v1601 = vadd.f32 %v1203, %v1600
        %v1602 = vpop.f32.mrf.mxu0
        %v1603 = vadd.f32 %v1207, %v1602
        %1604 = vmatprep.mubr.f32.mxu0 %v1117
        %1605 = vmatmul.mubr.f32.gmra.mxu0 %v1116
        %v1606 = vpop.f32.mrf.mxu0
        %v1607 = vadd.f32 %v1203, %v1606
        %v1608 = vpop.f32.mrf.mxu0
        %v1609 = vadd.f32 %v1207, %v1608
        %1610 = vmatprep.mubr.f32.mxu0 %v1119
        %1611 = vmatmul.mubr.f32.gmra.mxu0 %v1118
        %v1612 = vpop.f32.mrf.mxu0
        %v1613 = vadd.f32 %v1203, %v1612
        %v1614 = vpop.f32.mrf.mxu0
        %v1615 = vadd.f32 %v1207, %v1614
        %1616 = vmatprep.mubr.f32.mxu0 %v1121
        %1617 = vmatmul.mubr.f32.gmra.mxu0 %v1120
        %v1618 = vpop.f32.mrf.mxu0
        %v1619 = vadd.f32 %v1203, %v1618
        %v1620 = vpop.f32.mrf.mxu0
        %v1621 = vadd.f32 %v1207, %v1620
        %1622 = vmatprep.mubr.f32.mxu0 %v1123
        %1623 = vmatmul.mubr.f32.gmra.mxu0 %v1122
        %v1624 = vpop.f32.mrf.mxu0
        %v1625 = vadd.f32 %v1203, %v1624
        %v1626 = vpop.f32.mrf.mxu0
        %v1627 = vadd.f32 %v1207, %v1626
        %1628 = vmatprep.mubr.f32.mxu0 %v1125
        %1629 = vmatmul.mubr.f32.gmra.mxu0 %v1124
        %v1630 = vpop.f32.mrf.mxu0
        %v1631 = vadd.f32 %v1203, %v1630
        %v1632 = vpop.f32.mrf.mxu0
        %v1633 = vadd.f32 %v1207, %v1632
        %1634 = vmatprep.mubr.f32.mxu0 %v1127
        %1635 = vmatmul.mubr.f32.gmra.mxu0 %v1126
        %v1636 = vpop.f32.mrf.mxu0
        %v1637 = vadd.f32 %v1203, %v1636
        %v1638 = vpop.f32.mrf.mxu0
        %v1639 = vadd.f32 %v1207, %v1638
        %1640 = vmatprep.mubr.f32.mxu0 %v1129
        %1641 = vmatmul.mubr.f32.gmra.mxu0 %v1128
        %v1642 = vpop.f32.mrf.mxu0
        %v1643 = vadd.f32 %v1203, %v1642
        %v1644 = vpop.f32.mrf.mxu0
        %v1645 = vadd.f32 %v1207, %v1644
        %1646 = vmatprep.mubr.f32.mxu0 %v1131
        %1647 = vmatmul.mubr.f32.gmra.mxu0 %v1130
        %v1648 = vpop.f32.mrf.mxu0
        %v1649 = vadd.f32 %v1203, %v1648
        %v1650 = vpop.f32.mrf.mxu0
        %v1651 = vadd.f32 %v1207, %v1650
        %1652 = vmatprep.mubr.f32.mxu0 %v1133
        %1653 = vmatmul.mubr.f32.gmra.mxu0 %v1132
        %v1654 = vpop.f32.mrf.mxu0
        %v1655 = vadd.f32 %v1203, %v1654
        %v1656 = vpop.f32.mrf.mxu0
        %v1657 = vadd.f32 %v1207, %v1656
        %1658 = vdwg.mxu0
        %v1659 = vmax.f32 %v1277, 0.0
        %v1660 = vmax.f32 %v1279, 0.0
        %v1661 = vmax.f32 %v1283, 0.0
        %v1662 = vmax.f32 %v1285, 0.0
        %v1663 = vmax.f32 %v1289, 0.0
        %v1664 = vmax.f32 %v1291, 0.0
        %v1665 = vmax.f32 %v1295, 0.0
        %v1666 = vmax.f32 %v1297, 0.0
        %v1667 = vmax.f32 %v1301, 0.0
        %v1668 = vmax.f32 %v1303, 0.0
        %v1669 = vmax.f32 %v1307, 0.0
        %v1670 = vmax.f32 %v1309, 0.0
        %v1671 = vmax.f32 %v1313, 0.0
        %v1672 = vmax.f32 %v1315, 0.0
        %v1673 = vmax.f32 %v1319, 0.0
        %v1674 = vmax.f32 %v1321, 0.0
        %v1675 = vmax.f32 %v1325, 0.0
        %v1676 = vmax.f32 %v1327, 0.0
        %v1677 = vmax.f32 %v1331, 0.0
        %v1678 = vmax.f32 %v1333, 0.0
        %v1679 = vmax.f32 %v1337, 0.0
        %v1680 = vmax.f32 %v1339, 0.0
        %v1681 = vmax.f32 %v1343, 0.0
        %v1682 = vmax.f32 %v1345, 0.0
        %v1683 = vmax.f32 %v1349, 0.0
        %v1684 = vmax.f32 %v1351, 0.0
        %v1685 = vmax.f32 %v1355, 0.0
        %v1686 = vmax.f32 %v1357, 0.0
        %v1687 = vmax.f32 %v1361, 0.0
        %v1688 = vmax.f32 %v1363, 0.0
        %v1689 = vmax.f32 %v1367, 0.0
        %v1690 = vmax.f32 %v1369, 0.0
        %v1691 = vmax.f32 %v1373, 0.0
        %v1692 = vmax.f32 %v1375, 0.0
        %v1693 = vmax.f32 %v1379, 0.0
        %v1694 = vmax.f32 %v1381, 0.0
        %v1695 = vmax.f32 %v1385, 0.0
        %v1696 = vmax.f32 %v1387, 0.0
        %v1697 = vmax.f32 %v1391, 0.0
        %v1698 = vmax.f32 %v1393, 0.0
        %v1699 = vmax.f32 %v1397, 0.0
        %v1700 = vmax.f32 %v1399, 0.0
        %v1701 = vmax.f32 %v1403, 0.0
        %v1702 = vmax.f32 %v1405, 0.0
        %v1703 = vmax.f32 %v1409, 0.0
        %v1704 = vmax.f32 %v1411, 0.0
        %v1705 = vmax.f32 %v1415, 0.0
        %v1706 = vmax.f32 %v1417, 0.0
        %v1707 = vmax.f32 %v1421, 0.0
        %v1708 = vmax.f32 %v1423, 0.0
        %v1709 = vmax.f32 %v1427, 0.0
        %v1710 = vmax.f32 %v1429, 0.0
        %v1711 = vmax.f32 %v1433, 0.0
        %v1712 = vmax.f32 %v1435, 0.0
        %v1713 = vmax.f32 %v1439, 0.0
        %v1714 = vmax.f32 %v1441, 0.0
        %v1715 = vmax.f32 %v1445, 0.0
        %v1716 = vmax.f32 %v1447, 0.0
        %v1717 = vmax.f32 %v1451, 0.0
        %v1718 = vmax.f32 %v1453, 0.0
        %v1719 = vmax.f32 %v1457, 0.0
        %v1720 = vmax.f32 %v1459, 0.0
        %v1721 = vmax.f32 %v1463, 0.0
        %v1722 = vmax.f32 %v1465, 0.0
        %v1723 = vmax.f32 %v1469, 0.0
        %v1724 = vmax.f32 %v1471, 0.0
        %v1725 = vmax.f32 %v1475, 0.0
        %v1726 = vmax.f32 %v1477, 0.0
        %v1727 = vmax.f32 %v1481, 0.0
        %v1728 = vmax.f32 %v1483, 0.0
        %v1729 = vmax.f32 %v1487, 0.0
        %v1730 = vmax.f32 %v1489, 0.0
        %v1731 = vmax.f32 %v1493, 0.0
        %v1732 = vmax.f32 %v1495, 0.0
        %v1733 = vmax.f32 %v1499, 0.0
        %v1734 = vmax.f32 %v1501, 0.0
        %v1735 = vmax.f32 %v1505, 0.0
        %v1736 = vmax.f32 %v1507, 0.0
        %v1737 = vmax.f32 %v1511, 0.0
        %v1738 = vmax.f32 %v1513, 0.0
        %v1739 = vmax.f32 %v1517, 0.0
        %v1740 = vmax.f32 %v1519, 0.0
        %v1741 = vmax.f32 %v1523, 0.0
        %v1742 = vmax.f32 %v1525, 0.0
        %v1743 = vmax.f32 %v1529, 0.0
        %v1744 = vmax.f32 %v1531, 0.0
        %v1745 = vmax.f32 %v1535, 0.0
        %v1746 = vmax.f32 %v1537, 0.0
        %v1747 = vmax.f32 %v1541, 0.0
        %v1748 = vmax.f32 %v1543, 0.0
        %v1749 = vmax.f32 %v1547, 0.0
        %v1750 = vmax.f32 %v1549, 0.0
        %v1751 = vmax.f32 %v1553, 0.0
        %v1752 = vmax.f32 %v1555, 0.0
        %v1753 = vmax.f32 %v1559, 0.0
        %v1754 = vmax.f32 %v1561, 0.0
        %v1755 = vmax.f32 %v1565, 0.0
        %v1756 = vmax.f32 %v1567, 0.0
        %v1757 = vmax.f32 %v1571, 0.0
        %v1758 = vmax.f32 %v1573, 0.0
        %v1759 = vmax.f32 %v1577, 0.0
        %v1760 = vmax.f32 %v1579, 0.0
        %v1761 = vmax.f32 %v1583, 0.0
        %v1762 = vmax.f32 %v1585, 0.0
        %v1763 = vmax.f32 %v1589, 0.0
        %v1764 = vmax.f32 %v1591, 0.0
        %v1765 = vmax.f32 %v1595, 0.0
        %v1766 = vmax.f32 %v1597, 0.0
        %v1767 = vmax.f32 %v1601, 0.0
        %v1768 = vmax.f32 %v1603, 0.0
        %v1769 = vmax.f32 %v1607, 0.0
        %v1770 = vmax.f32 %v1609, 0.0
        %v1771 = vmax.f32 %v1613, 0.0
        %v1772 = vmax.f32 %v1615, 0.0
        %v1773 = vmax.f32 %v1619, 0.0
        %v1774 = vmax.f32 %v1621, 0.0
        %v1775 = vmax.f32 %v1625, 0.0
        %v1776 = vmax.f32 %v1627, 0.0
        %v1777 = vmax.f32 %v1631, 0.0
        %v1778 = vmax.f32 %v1633, 0.0
        %v1779 = vmax.f32 %v1637, 0.0
        %v1780 = vmax.f32 %v1639, 0.0
        %v1781 = vmax.f32 %v1643, 0.0
        %v1782 = vmax.f32 %v1645, 0.0
        %v1783 = vmax.f32 %v1649, 0.0
        %v1784 = vmax.f32 %v1651, 0.0
        %v1785 = vmax.f32 %v1655, 0.0
        %v1786 = vmax.f32 %v1657, 0.0
        %v1787 = vld [vmem:[%s5] sm:$0xff]
        %v1788 = vld [vmem:[%s5 + $0x8] sm:$0xff]
        %v1789 = vld [vmem:[%s5 + $0x10] sm:$0xff]
        %v1790 = vld [vmem:[%s5 + $0x18] sm:$0xff]
        %v1791 = vld [vmem:[%s5 + $0x20] sm:$0xff]
        %v1792 = vld [vmem:[%s5 + $0x28] sm:$0xff]
        %v1793 = vld [vmem:[%s5 + $0x30] sm:$0xff]
        %v1794 = vld [vmem:[%s5 + $0x38] sm:$0xff]
        %v1795 = vld [vmem:[%s5 + $0x40] sm:$0xff]
        %v1796 = vld [vmem:[%s5 + $0x48] sm:$0xff]
        %v1797 = vld [vmem:[%s5 + $0x50] sm:$0xff]
        %v1798 = vld [vmem:[%s5 + $0x58] sm:$0xff]
        %v1799 = vld [vmem:[%s5 + $0x60] sm:$0xff]
        %v1800 = vld [vmem:[%s5 + $0x68] sm:$0xff]
        %v1801 = vld [vmem:[%s5 + $0x70] sm:$0xff]
        %v1802 = vld [vmem:[%s5 + $0x78] sm:$0xff]
        %v1803 = vld [vmem:[%s5 + $0x80] sm:$0xff]
        %v1804 = vld [vmem:[%s5 + $0x88] sm:$0xff]
        %v1805 = vld [vmem:[%s5 + $0x90] sm:$0xff]
        %v1806 = vld [vmem:[%s5 + $0x98] sm:$0xff]
        %v1807 = vld [vmem:[%s5 + $0xa0] sm:$0xff]
        %v1808 = vld [vmem:[%s5 + $0xa8] sm:$0xff]
        %v1809 = vld [vmem:[%s5 + $0xb0] sm:$0xff]
        %v1810 = vld [vmem:[%s5 + $0xb8] sm:$0xff]
        %v1811 = vld [vmem:[%s5 + $0xc0] sm:$0xff]
        %v1812 = vld [vmem:[%s5 + $0xc8] sm:$0xff]
        %v1813 = vld [vmem:[%s5 + $0xd0] sm:$0xff]
        %v1814 = vld [vmem:[%s5 + $0xd8] sm:$0xff]
        %v1815 = vld [vmem:[%s5 + $0xe0] sm:$0xff]
        %v1816 = vld [vmem:[%s5 + $0xe8] sm:$0xff]
        %v1817 = vld [vmem:[%s5 + $0xf0] sm:$0xff]
        %v1818 = vld [vmem:[%s5 + $0xf8] sm:$0xff]
        %v1819 = vld [vmem:[%s6] sm:$0x1]
        %v1821 = vlaneseq
        %v1822 = vshrl.u32 %v1821, 7
        %v1823 = vsub.s32 0, %v1822
        %v1824 = vrot.slane %v1819, %v1823
        %1826 = vmatprep.subr.mxu0 0.0
        %1827 = vmatpush1.msra.mxu0 %v1802
        %1828 = vmatprep.subr.mxu0 0.0
        %1829 = vmatpush1.msra.mxu0 %v1801
        %1830 = vmatprep.subr.mxu0 0.0
        %1831 = vmatpush1.msra.mxu0 %v1800
        %1832 = vmatprep.subr.mxu0 0.0
        %1833 = vmatpush1.msra.mxu0 %v1799
        %1834 = vmatprep.subr.mxu0 0.0
        %1835 = vmatpush1.msra.mxu0 %v1798
        %1836 = vmatprep.subr.mxu0 0.0
        %1837 = vmatpush1.msra.mxu0 %v1797
        %1838 = vmatprep.subr.mxu0 0.0
        %1839 = vmatpush1.msra.mxu0 %v1796
        %1840 = vmatprep.subr.mxu0 0.0
        %1841 = vmatpush1.msra.mxu0 %v1795
        %1842 = vmatprep.subr.mxu0 0.0
        %1843 = vmatpush1.msra.mxu0 %v1794
        %1844 = vmatprep.subr.mxu0 0.0
        %1845 = vmatpush1.msra.mxu0 %v1793
        %1846 = vmatprep.subr.mxu0 0.0
        %1847 = vmatpush1.msra.mxu0 %v1792
        %1848 = vmatprep.subr.mxu0 0.0
        %1849 = vmatpush1.msra.mxu0 %v1791
        %1850 = vmatprep.subr.mxu0 0.0
        %1851 = vmatpush1.msra.mxu0 %v1790
        %1852 = vmatprep.subr.mxu0 0.0
        %1853 = vmatpush1.msra.mxu0 %v1789
        %1854 = vmatprep.subr.mxu0 0.0
        %1855 = vmatpush1.msra.mxu0 %v1788
        %1856 = vmatprep.subr.mxu0 0.0
        %1857 = vmatpush1.msra.mxu0 %v1787
        %1858 = vmatprep.subr.mxu0 0.0
        %1859 = vmatpush2.msra.mxu0 %v1818
        %1860 = vmatprep.subr.mxu0 0.0
        %1861 = vmatpush2.msra.mxu0 %v1817
        %1862 = vmatprep.subr.mxu0 0.0
        %1863 = vmatpush2.msra.mxu0 %v1816
        %1864 = vmatprep.subr.mxu0 0.0
        %1865 = vmatpush2.msra.mxu0 %v1815
        %1866 = vmatprep.subr.mxu0 0.0
        %1867 = vmatpush2.msra.mxu0 %v1814
        %1868 = vmatprep.subr.mxu0 0.0
        %1869 = vmatpush2.msra.mxu0 %v1813
        %1870 = vmatprep.subr.mxu0 0.0
        %1871 = vmatpush2.msra.mxu0 %v1812
        %1872 = vmatprep.subr.mxu0 0.0
        %1873 = vmatpush2.msra.mxu0 %v1811
        %1874 = vmatprep.subr.mxu0 0.0
        %1875 = vmatpush2.msra.mxu0 %v1810
        %1876 = vmatprep.subr.mxu0 0.0
        %1877 = vmatpush2.msra.mxu0 %v1809
        %1878 = vmatprep.subr.mxu0 0.0
        %1879 = vmatpush2.msra.mxu0 %v1808
        %1880 = vmatprep.subr.mxu0 0.0
        %1881 = vmatpush2.msra.mxu0 %v1807
        %1882 = vmatprep.subr.mxu0 0.0
        %1883 = vmatpush2.msra.mxu0 %v1806
        %1884 = vmatprep.subr.mxu0 0.0
        %1885 = vmatpush2.msra.mxu0 %v1805
        %1886 = vmatprep.subr.mxu0 0.0
        %1887 = vmatpush2.msra.mxu0 %v1804
        %1888 = vmatprep.subr.mxu0 0.0
        %1889 = vmatpush2.msra.mxu0 %v1803
        %1890 = vmatprep.mubr.f32.mxu0 %v1660
        %1891 = vmatmul.mubr.f32.gmra.mxu0 %v1659
        %v1892 = vpop.f32.mrf.mxu0
        %v1893 = vadd.f32 %v1824, %v1892
        %v1894 = vpop.f32.mrf.mxu0
        %1895 = vmatprep.mubr.f32.mxu0 %v1662
        %1896 = vmatmul.mubr.f32.gmra.mxu0 %v1661
        %v1897 = vpop.f32.mrf.mxu0
        %v1898 = vadd.f32 %v1824, %v1897
        %v1899 = vpop.f32.mrf.mxu0
        %1900 = vmatprep.mubr.f32.mxu0 %v1664
        %1901 = vmatmul.mubr.f32.gmra.mxu0 %v1663
        %v1902 = vpop.f32.mrf.mxu0
        %v1903 = vadd.f32 %v1824, %v1902
        %v1904 = vpop.f32.mrf.mxu0
        %1905 = vmatprep.mubr.f32.mxu0 %v1666
        %1906 = vmatmul.mubr.f32.gmra.mxu0 %v1665
        %v1907 = vpop.f32.mrf.mxu0
        %v1908 = vadd.f32 %v1824, %v1907
        %v1909 = vpop.f32.mrf.mxu0
        %1910 = vmatprep.mubr.f32.mxu0 %v1668
        %1911 = vmatmul.mubr.f32.gmra.mxu0 %v1667
        %v1912 = vpop.f32.mrf.mxu0
        %v1913 = vadd.f32 %v1824, %v1912
        %v1914 = vpop.f32.mrf.mxu0
        %1915 = vmatprep.mubr.f32.mxu0 %v1670
        %1916 = vmatmul.mubr.f32.gmra.mxu0 %v1669
        %v1917 = vpop.f32.mrf.mxu0
        %v1918 = vadd.f32 %v1824, %v1917
        %v1919 = vpop.f32.mrf.mxu0
        %1920 = vmatprep.mubr.f32.mxu0 %v1672
        %1921 = vmatmul.mubr.f32.gmra.mxu0 %v1671
        %v1922 = vpop.f32.mrf.mxu0
        %v1923 = vadd.f32 %v1824, %v1922
        %v1924 = vpop.f32.mrf.mxu0
        %1925 = vmatprep.mubr.f32.mxu0 %v1674
        %1926 = vmatmul.mubr.f32.gmra.mxu0 %v1673
        %v1927 = vpop.f32.mrf.mxu0
        %v1928 = vadd.f32 %v1824, %v1927
        %v1929 = vpop.f32.mrf.mxu0
        %1930 = vmatprep.mubr.f32.mxu0 %v1676
        %1931 = vmatmul.mubr.f32.gmra.mxu0 %v1675
        %v1932 = vpop.f32.mrf.mxu0
        %v1933 = vadd.f32 %v1824, %v1932
        %v1934 = vpop.f32.mrf.mxu0
        %1935 = vmatprep.mubr.f32.mxu0 %v1678
        %1936 = vmatmul.mubr.f32.gmra.mxu0 %v1677
        %v1937 = vpop.f32.mrf.mxu0
        %v1938 = vadd.f32 %v1824, %v1937
        %v1939 = vpop.f32.mrf.mxu0
        %1940 = vmatprep.mubr.f32.mxu0 %v1680
        %1941 = vmatmul.mubr.f32.gmra.mxu0 %v1679
        %v1942 = vpop.f32.mrf.mxu0
        %v1943 = vadd.f32 %v1824, %v1942
        %v1944 = vpop.f32.mrf.mxu0
        %1945 = vmatprep.mubr.f32.mxu0 %v1682
        %1946 = vmatmul.mubr.f32.gmra.mxu0 %v1681
        %v1947 = vpop.f32.mrf.mxu0
        %v1948 = vadd.f32 %v1824, %v1947
        %v1949 = vpop.f32.mrf.mxu0
        %1950 = vmatprep.mubr.f32.mxu0 %v1684
        %1951 = vmatmul.mubr.f32.gmra.mxu0 %v1683
        %v1952 = vpop.f32.mrf.mxu0
        %v1953 = vadd.f32 %v1824, %v1952
        %v1954 = vpop.f32.mrf.mxu0
        %1955 = vmatprep.mubr.f32.mxu0 %v1686
        %1956 = vmatmul.mubr.f32.gmra.mxu0 %v1685
        %v1957 = vpop.f32.mrf.mxu0
        %v1958 = vadd.f32 %v1824, %v1957
        %v1959 = vpop.f32.mrf.mxu0
        %1960 = vmatprep.mubr.f32.mxu0 %v1688
        %1961 = vmatmul.mubr.f32.gmra.mxu0 %v1687
        %v1962 = vpop.f32.mrf.mxu0
        %v1963 = vadd.f32 %v1824, %v1962
        %v1964 = vpop.f32.mrf.mxu0
        %1965 = vmatprep.mubr.f32.mxu0 %v1690
        %1966 = vmatmul.mubr.f32.gmra.mxu0 %v1689
        %v1967 = vpop.f32.mrf.mxu0
        %v1968 = vadd.f32 %v1824, %v1967
        %v1969 = vpop.f32.mrf.mxu0
        %1970 = vmatprep.mubr.f32.mxu0 %v1692
        %1971 = vmatmul.mubr.f32.gmra.mxu0 %v1691
        %v1972 = vpop.f32.mrf.mxu0
        %v1973 = vadd.f32 %v1824, %v1972
        %v1974 = vpop.f32.mrf.mxu0
        %1975 = vmatprep.mubr.f32.mxu0 %v1694
        %1976 = vmatmul.mubr.f32.gmra.mxu0 %v1693
        %v1977 = vpop.f32.mrf.mxu0
        %v1978 = vadd.f32 %v1824, %v1977
        %v1979 = vpop.f32.mrf.mxu0
        %1980 = vmatprep.mubr.f32.mxu0 %v1696
        %1981 = vmatmul.mubr.f32.gmra.mxu0 %v1695
        %v1982 = vpop.f32.mrf.mxu0
        %v1983 = vadd.f32 %v1824, %v1982
        %v1984 = vpop.f32.mrf.mxu0
        %1985 = vmatprep.mubr.f32.mxu0 %v1698
        %1986 = vmatmul.mubr.f32.gmra.mxu0 %v1697
        %v1987 = vpop.f32.mrf.mxu0
        %v1988 = vadd.f32 %v1824, %v1987
        %v1989 = vpop.f32.mrf.mxu0
        %1990 = vmatprep.mubr.f32.mxu0 %v1700
        %1991 = vmatmul.mubr.f32.gmra.mxu0 %v1699
        %v1992 = vpop.f32.mrf.mxu0
        %v1993 = vadd.f32 %v1824, %v1992
        %v1994 = vpop.f32.mrf.mxu0
        %1995 = vmatprep.mubr.f32.mxu0 %v1702
        %1996 = vmatmul.mubr.f32.gmra.mxu0 %v1701
        %v1997 = vpop.f32.mrf.mxu0
        %v1998 = vadd.f32 %v1824, %v1997
        %v1999 = vpop.f32.mrf.mxu0
        %2000 = vmatprep.mubr.f32.mxu0 %v1704
        %2001 = vmatmul.mubr.f32.gmra.mxu0 %v1703
        %v2002 = vpop.f32.mrf.mxu0
        %v2003 = vadd.f32 %v1824, %v2002
        %v2004 = vpop.f32.mrf.mxu0
        %2005 = vmatprep.mubr.f32.mxu0 %v1706
        %2006 = vmatmul.mubr.f32.gmra.mxu0 %v1705
        %v2007 = vpop.f32.mrf.mxu0
        %v2008 = vadd.f32 %v1824, %v2007
        %v2009 = vpop.f32.mrf.mxu0
        %2010 = vmatprep.mubr.f32.mxu0 %v1708
        %2011 = vmatmul.mubr.f32.gmra.mxu0 %v1707
        %v2012 = vpop.f32.mrf.mxu0
        %v2013 = vadd.f32 %v1824, %v2012
        %v2014 = vpop.f32.mrf.mxu0
        %2015 = vmatprep.mubr.f32.mxu0 %v1710
        %2016 = vmatmul.mubr.f32.gmra.mxu0 %v1709
        %v2017 = vpop.f32.mrf.mxu0
        %v2018 = vadd.f32 %v1824, %v2017
        %v2019 = vpop.f32.mrf.mxu0
        %2020 = vmatprep.mubr.f32.mxu0 %v1712
        %2021 = vmatmul.mubr.f32.gmra.mxu0 %v1711
        %v2022 = vpop.f32.mrf.mxu0
        %v2023 = vadd.f32 %v1824, %v2022
        %v2024 = vpop.f32.mrf.mxu0
        %2025 = vmatprep.mubr.f32.mxu0 %v1714
        %2026 = vmatmul.mubr.f32.gmra.mxu0 %v1713
        %v2027 = vpop.f32.mrf.mxu0
        %v2028 = vadd.f32 %v1824, %v2027
        %v2029 = vpop.f32.mrf.mxu0
        %2030 = vmatprep.mubr.f32.mxu0 %v1716
        %2031 = vmatmul.mubr.f32.gmra.mxu0 %v1715
        %v2032 = vpop.f32.mrf.mxu0
        %v2033 = vadd.f32 %v1824, %v2032
        %v2034 = vpop.f32.mrf.mxu0
        %2035 = vmatprep.mubr.f32.mxu0 %v1718
        %2036 = vmatmul.mubr.f32.gmra.mxu0 %v1717
        %v2037 = vpop.f32.mrf.mxu0
        %v2038 = vadd.f32 %v1824, %v2037
        %v2039 = vpop.f32.mrf.mxu0
        %2040 = vmatprep.mubr.f32.mxu0 %v1720
        %2041 = vmatmul.mubr.f32.gmra.mxu0 %v1719
        %v2042 = vpop.f32.mrf.mxu0
        %v2043 = vadd.f32 %v1824, %v2042
        %v2044 = vpop.f32.mrf.mxu0
        %2045 = vmatprep.mubr.f32.mxu0 %v1722
        %2046 = vmatmul.mubr.f32.gmra.mxu0 %v1721
        %v2047 = vpop.f32.mrf.mxu0
        %v2048 = vadd.f32 %v1824, %v2047
        %v2049 = vpop.f32.mrf.mxu0
        %2050 = vmatprep.mubr.f32.mxu0 %v1724
        %2051 = vmatmul.mubr.f32.gmra.mxu0 %v1723
        %v2052 = vpop.f32.mrf.mxu0
        %v2053 = vadd.f32 %v1824, %v2052
        %v2054 = vpop.f32.mrf.mxu0
        %2055 = vmatprep.mubr.f32.mxu0 %v1726
        %2056 = vmatmul.mubr.f32.gmra.mxu0 %v1725
        %v2057 = vpop.f32.mrf.mxu0
        %v2058 = vadd.f32 %v1824, %v2057
        %v2059 = vpop.f32.mrf.mxu0
        %2060 = vmatprep.mubr.f32.mxu0 %v1728
        %2061 = vmatmul.mubr.f32.gmra.mxu0 %v1727
        %v2062 = vpop.f32.mrf.mxu0
        %v2063 = vadd.f32 %v1824, %v2062
        %v2064 = vpop.f32.mrf.mxu0
        %2065 = vmatprep.mubr.f32.mxu0 %v1730
        %2066 = vmatmul.mubr.f32.gmra.mxu0 %v1729
        %v2067 = vpop.f32.mrf.mxu0
        %v2068 = vadd.f32 %v1824, %v2067
        %v2069 = vpop.f32.mrf.mxu0
        %2070 = vmatprep.mubr.f32.mxu0 %v1732
        %2071 = vmatmul.mubr.f32.gmra.mxu0 %v1731
        %v2072 = vpop.f32.mrf.mxu0
        %v2073 = vadd.f32 %v1824, %v2072
        %v2074 = vpop.f32.mrf.mxu0
        %2075 = vmatprep.mubr.f32.mxu0 %v1734
        %2076 = vmatmul.mubr.f32.gmra.mxu0 %v1733
        %v2077 = vpop.f32.mrf.mxu0
        %v2078 = vadd.f32 %v1824, %v2077
        %v2079 = vpop.f32.mrf.mxu0
        %2080 = vmatprep.mubr.f32.mxu0 %v1736
        %2081 = vmatmul.mubr.f32.gmra.mxu0 %v1735
        %v2082 = vpop.f32.mrf.mxu0
        %v2083 = vadd.f32 %v1824, %v2082
        %v2084 = vpop.f32.mrf.mxu0
        %2085 = vmatprep.mubr.f32.mxu0 %v1738
        %2086 = vmatmul.mubr.f32.gmra.mxu0 %v1737
        %v2087 = vpop.f32.mrf.mxu0
        %v2088 = vadd.f32 %v1824, %v2087
        %v2089 = vpop.f32.mrf.mxu0
        %2090 = vmatprep.mubr.f32.mxu0 %v1740
        %2091 = vmatmul.mubr.f32.gmra.mxu0 %v1739
        %v2092 = vpop.f32.mrf.mxu0
        %v2093 = vadd.f32 %v1824, %v2092
        %v2094 = vpop.f32.mrf.mxu0
        %2095 = vmatprep.mubr.f32.mxu0 %v1742
        %2096 = vmatmul.mubr.f32.gmra.mxu0 %v1741
        %v2097 = vpop.f32.mrf.mxu0
        %v2098 = vadd.f32 %v1824, %v2097
        %v2099 = vpop.f32.mrf.mxu0
        %2100 = vmatprep.mubr.f32.mxu0 %v1744
        %2101 = vmatmul.mubr.f32.gmra.mxu0 %v1743
        %v2102 = vpop.f32.mrf.mxu0
        %v2103 = vadd.f32 %v1824, %v2102
        %v2104 = vpop.f32.mrf.mxu0
        %2105 = vmatprep.mubr.f32.mxu0 %v1746
        %2106 = vmatmul.mubr.f32.gmra.mxu0 %v1745
        %v2107 = vpop.f32.mrf.mxu0
        %v2108 = vadd.f32 %v1824, %v2107
        %v2109 = vpop.f32.mrf.mxu0
        %2110 = vmatprep.mubr.f32.mxu0 %v1748
        %2111 = vmatmul.mubr.f32.gmra.mxu0 %v1747
        %v2112 = vpop.f32.mrf.mxu0
        %v2113 = vadd.f32 %v1824, %v2112
        %v2114 = vpop.f32.mrf.mxu0
        %2115 = vmatprep.mubr.f32.mxu0 %v1750
        %2116 = vmatmul.mubr.f32.gmra.mxu0 %v1749
        %v2117 = vpop.f32.mrf.mxu0
        %v2118 = vadd.f32 %v1824, %v2117
        %v2119 = vpop.f32.mrf.mxu0
        %2120 = vmatprep.mubr.f32.mxu0 %v1752
        %2121 = vmatmul.mubr.f32.gmra.mxu0 %v1751
        %v2122 = vpop.f32.mrf.mxu0
        %v2123 = vadd.f32 %v1824, %v2122
        %v2124 = vpop.f32.mrf.mxu0
        %2125 = vmatprep.mubr.f32.mxu0 %v1754
        %2126 = vmatmul.mubr.f32.gmra.mxu0 %v1753
        %v2127 = vpop.f32.mrf.mxu0
        %v2128 = vadd.f32 %v1824, %v2127
        %v2129 = vpop.f32.mrf.mxu0
        %2130 = vmatprep.mubr.f32.mxu0 %v1756
        %2131 = vmatmul.mubr.f32.gmra.mxu0 %v1755
        %v2132 = vpop.f32.mrf.mxu0
        %v2133 = vadd.f32 %v1824, %v2132
        %v2134 = vpop.f32.mrf.mxu0
        %2135 = vmatprep.mubr.f32.mxu0 %v1758
        %2136 = vmatmul.mubr.f32.gmra.mxu0 %v1757
        %v2137 = vpop.f32.mrf.mxu0
        %v2138 = vadd.f32 %v1824, %v2137
        %v2139 = vpop.f32.mrf.mxu0
        %2140 = vmatprep.mubr.f32.mxu0 %v1760
        %2141 = vmatmul.mubr.f32.gmra.mxu0 %v1759
        %v2142 = vpop.f32.mrf.mxu0
        %v2143 = vadd.f32 %v1824, %v2142
        %v2144 = vpop.f32.mrf.mxu0
        %2145 = vmatprep.mubr.f32.mxu0 %v1762
        %2146 = vmatmul.mubr.f32.gmra.mxu0 %v1761
        %v2147 = vpop.f32.mrf.mxu0
        %v2148 = vadd.f32 %v1824, %v2147
        %v2149 = vpop.f32.mrf.mxu0
        %2150 = vmatprep.mubr.f32.mxu0 %v1764
        %2151 = vmatmul.mubr.f32.gmra.mxu0 %v1763
        %v2152 = vpop.f32.mrf.mxu0
        %v2153 = vadd.f32 %v1824, %v2152
        %v2154 = vpop.f32.mrf.mxu0
        %2155 = vmatprep.mubr.f32.mxu0 %v1766
        %2156 = vmatmul.mubr.f32.gmra.mxu0 %v1765
        %v2157 = vpop.f32.mrf.mxu0
        %v2158 = vadd.f32 %v1824, %v2157
        %v2159 = vpop.f32.mrf.mxu0
        %2160 = vmatprep.mubr.f32.mxu0 %v1768
        %2161 = vmatmul.mubr.f32.gmra.mxu0 %v1767
        %v2162 = vpop.f32.mrf.mxu0
        %v2163 = vadd.f32 %v1824, %v2162
        %v2164 = vpop.f32.mrf.mxu0
        %2165 = vmatprep.mubr.f32.mxu0 %v1770
        %2166 = vmatmul.mubr.f32.gmra.mxu0 %v1769
        %v2167 = vpop.f32.mrf.mxu0
        %v2168 = vadd.f32 %v1824, %v2167
        %v2169 = vpop.f32.mrf.mxu0
        %2170 = vmatprep.mubr.f32.mxu0 %v1772
        %2171 = vmatmul.mubr.f32.gmra.mxu0 %v1771
        %v2172 = vpop.f32.mrf.mxu0
        %v2173 = vadd.f32 %v1824, %v2172
        %v2174 = vpop.f32.mrf.mxu0
        %2175 = vmatprep.mubr.f32.mxu0 %v1774
        %2176 = vmatmul.mubr.f32.gmra.mxu0 %v1773
        %v2177 = vpop.f32.mrf.mxu0
        %v2178 = vadd.f32 %v1824, %v2177
        %v2179 = vpop.f32.mrf.mxu0
        %2180 = vmatprep.mubr.f32.mxu0 %v1776
        %2181 = vmatmul.mubr.f32.gmra.mxu0 %v1775
        %v2182 = vpop.f32.mrf.mxu0
        %v2183 = vadd.f32 %v1824, %v2182
        %v2184 = vpop.f32.mrf.mxu0
        %2185 = vmatprep.mubr.f32.mxu0 %v1778
        %2186 = vmatmul.mubr.f32.gmra.mxu0 %v1777
        %v2187 = vpop.f32.mrf.mxu0
        %v2188 = vadd.f32 %v1824, %v2187
        %v2189 = vpop.f32.mrf.mxu0
        %2190 = vmatprep.mubr.f32.mxu0 %v1780
        %2191 = vmatmul.mubr.f32.gmra.mxu0 %v1779
        %v2192 = vpop.f32.mrf.mxu0
        %v2193 = vadd.f32 %v1824, %v2192
        %v2194 = vpop.f32.mrf.mxu0
        %2195 = vmatprep.mubr.f32.mxu0 %v1782
        %2196 = vmatmul.mubr.f32.gmra.mxu0 %v1781
        %v2197 = vpop.f32.mrf.mxu0
        %v2198 = vadd.f32 %v1824, %v2197
        %v2199 = vpop.f32.mrf.mxu0
        %2200 = vmatprep.mubr.f32.mxu0 %v1784
        %2201 = vmatmul.mubr.f32.gmra.mxu0 %v1783
        %v2202 = vpop.f32.mrf.mxu0
        %v2203 = vadd.f32 %v1824, %v2202
        %v2204 = vpop.f32.mrf.mxu0
        %2205 = vmatprep.mubr.f32.mxu0 %v1786
        %2206 = vmatmul.mubr.f32.gmra.mxu0 %v1785
        %v2207 = vpop.f32.mrf.mxu0
        %v2208 = vadd.f32 %v1824, %v2207
        %v2209 = vpop.f32.mrf.mxu0
        %2210 = vdwg.mxu0
        %2211 = vst [vmem:[%s272] sm:$0xff] %v1893
        %2212 = vst [vmem:[%s272 + $0x8] sm:$0xff] %v1898
        %2213 = vst [vmem:[%s272 + $0x10] sm:$0xff] %v1903
        %2214 = vst [vmem:[%s272 + $0x18] sm:$0xff] %v1908
        %2215 = vst [vmem:[%s272 + $0x20] sm:$0xff] %v1913
        %2216 = vst [vmem:[%s272 + $0x28] sm:$0xff] %v1918
        %2217 = vst [vmem:[%s272 + $0x30] sm:$0xff] %v1923
        %2218 = vst [vmem:[%s272 + $0x38] sm:$0xff] %v1928
        %2219 = vst [vmem:[%s272 + $0x40] sm:$0xff] %v1933
        %2220 = vst [vmem:[%s272 + $0x48] sm:$0xff] %v1938
        %2221 = vst [vmem:[%s272 + $0x50] sm:$0xff] %v1943
        %2222 = vst [vmem:[%s272 + $0x58] sm:$0xff] %v1948
        %2223 = vst [vmem:[%s272 + $0x60] sm:$0xff] %v1953
        %2224 = vst [vmem:[%s272 + $0x68] sm:$0xff] %v1958
        %2225 = vst [vmem:[%s272 + $0x70] sm:$0xff] %v1963
        %2226 = vst [vmem:[%s272 + $0x78] sm:$0xff] %v1968
        %2227 = vst [vmem:[%s272 + $0x80] sm:$0xff] %v1973
        %2228 = vst [vmem:[%s272 + $0x88] sm:$0xff] %v1978
        %2229 = vst [vmem:[%s272 + $0x90] sm:$0xff] %v1983
        %2230 = vst [vmem:[%s272 + $0x98] sm:$0xff] %v1988
        %2231 = vst [vmem:[%s272 + $0xa0] sm:$0xff] %v1993
        %2232 = vst [vmem:[%s272 + $0xa8] sm:$0xff] %v1998
        %2233 = vst [vmem:[%s272 + $0xb0] sm:$0xff] %v2003
        %2234 = vst [vmem:[%s272 + $0xb8] sm:$0xff] %v2008
        %2235 = vst [vmem:[%s272 + $0xc0] sm:$0xff] %v2013
        %2236 = vst [vmem:[%s272 + $0xc8] sm:$0xff] %v2018
        %2237 = vst [vmem:[%s272 + $0xd0] sm:$0xff] %v2023
        %2238 = vst [vmem:[%s272 + $0xd8] sm:$0xff] %v2028
        %2239 = vst [vmem:[%s272 + $0xe0] sm:$0xff] %v2033
        %2240 = vst [vmem:[%s272 + $0xe8] sm:$0xff] %v2038
        %2241 = vst [vmem:[%s272 + $0xf0] sm:$0xff] %v2043
        %2242 = vst [vmem:[%s272 + $0xf8] sm:$0xff] %v2048
        %2243 = vst [vmem:[%s272 + $0x100] sm:$0xff] %v2053
        %2244 = vst [vmem:[%s272 + $0x108] sm:$0xff] %v2058
        %2245 = vst [vmem:[%s272 + $0x110] sm:$0xff] %v2063
        %2246 = vst [vmem:[%s272 + $0x118] sm:$0xff] %v2068
        %2247 = vst [vmem:[%s272 + $0x120] sm:$0xff] %v2073
        %2248 = vst [vmem:[%s272 + $0x128] sm:$0xff] %v2078
        %2249 = vst [vmem:[%s272 + $0x130] sm:$0xff] %v2083
        %2250 = vst [vmem:[%s272 + $0x138] sm:$0xff] %v2088
        %2251 = vst [vmem:[%s272 + $0x140] sm:$0xff] %v2093
        %2252 = vst [vmem:[%s272 + $0x148] sm:$0xff] %v2098
        %2253 = vst [vmem:[%s272 + $0x150] sm:$0xff] %v2103
        %2254 = vst [vmem:[%s272 + $0x158] sm:$0xff] %v2108
        %2255 = vst [vmem:[%s272 + $0x160] sm:$0xff] %v2113
        %2256 = vst [vmem:[%s272 + $0x168] sm:$0xff] %v2118
        %2257 = vst [vmem:[%s272 + $0x170] sm:$0xff] %v2123
        %2258 = vst [vmem:[%s272 + $0x178] sm:$0xff] %v2128
        %2259 = vst [vmem:[%s272 + $0x180] sm:$0xff] %v2133
        %2260 = vst [vmem:[%s272 + $0x188] sm:$0xff] %v2138
        %2261 = vst [vmem:[%s272 + $0x190] sm:$0xff] %v2143
        %2262 = vst [vmem:[%s272 + $0x198] sm:$0xff] %v2148
        %2263 = vst [vmem:[%s272 + $0x1a0] sm:$0xff] %v2153
        %2264 = vst [vmem:[%s272 + $0x1a8] sm:$0xff] %v2158
        %2265 = vst [vmem:[%s272 + $0x1b0] sm:$0xff] %v2163
        %2266 = vst [vmem:[%s272 + $0x1b8] sm:$0xff] %v2168
        %2267 = vst [vmem:[%s272 + $0x1c0] sm:$0xff] %v2173
        %2268 = vst [vmem:[%s272 + $0x1c8] sm:$0xff] %v2178
        %2269 = vst [vmem:[%s272 + $0x1d0] sm:$0xff] %v2183
        %2270 = vst [vmem:[%s272 + $0x1d8] sm:$0xff] %v2188
        %2271 = vst [vmem:[%s272 + $0x1e0] sm:$0xff] %v2193
        %2272 = vst [vmem:[%s272 + $0x1e8] sm:$0xff] %v2198
        %2273 = vst [vmem:[%s272 + $0x1f0] sm:$0xff] %v2203
        %2274 = vst [vmem:[%s272 + $0x1f8] sm:$0xff] %v2208
        %s2275 = sand.u32 %s181, 1
        %s2276 = scalar_lea.sflag [#allocation3], %s2275
        %s2277 = sand.u32 %s181, 1
        %s2278 = smul.addr %s2277, 512
        %s2279 = scalar_lea.vmem [#allocation2], %s2278
        // Predicated region
        $region49: #{tpu_custom_call.1} parent=47 // pred_check
          %p2280 = pneg %p191
        $region50: #{tpu_custom_call.1} parent=47 // pred_check_branch
          %2282 = sbr.rel (%p2280) target = $region52
        $region51: #{tpu_custom_call.1} parent=47 // pred_region
          %s2283 = smul.u32 64, %s21
          %s2285 = ssub.s32 8192, 8192
          %2286 = vsyncadd %s2276, %s2285
          %s2287 = smul.addr %s2283, 128
          %s2288 = scalar_lea.hbm %s7, %s2287
          %s2289 = sshll.u32 %s2279, 4
          %s2290 = int_to_ptr.vmem [resolvable:$true] %s2289
          %2295 = dma.vmem_to_hbm [thread:$0]  %s2290, 8192, %s2288, %s2276, 128, 128, 8
        $region52: #{tpu_custom_call.1} parent=47 // pred_fallthru
          _
      $region48: #{tpu_custom_call.1} parent=5 // pred_fallthru
        _
      %p2296 = scmp.le.s32.totalorder 2, %s16
      // Predicated region
      $region53: #{tpu_custom_call.1} parent=5 // pred_check
        %p2297 = pneg %p2296
      $region54: #{tpu_custom_call.1} parent=5 // pred_check_branch
        %2299 = sbr.rel (%p2297) target = $region56
      $region55: #{tpu_custom_call.1} parent=5 // pred_region
        %s2300 = ssub.s32 %s16, 2
        // Predicated region
        $region57: #{tpu_custom_call.1} parent=55 // pred_check
          %p2301 = pneg %p197
        $region58: #{tpu_custom_call.1} parent=55 // pred_check_branch
          %2303 = sbr.rel (%p2301) target = $region60
        $region59: #{tpu_custom_call.1} parent=55 // pred_region
          %s2304 = sand.u32 %s182, 1
          %s2305 = scalar_lea.sflag [#allocation3], %s2304
          %s2306 = sand.u32 %s182, 1
          %s2307 = smul.addr %s2306, 512
          %s2308 = scalar_lea.vmem [#allocation2], %s2307
          %2309 = dma.done %s2305, 8192
        $region60: #{tpu_custom_call.1} parent=55 // pred_fallthru
          _
      $region56: #{tpu_custom_call.1} parent=5 // pred_fallthru
        _
    $region6: #{tpu_custom_call.1} parent=1 // loop_footer
      %s20 = sadd.s32 1, %s16
    $region7: #{tpu_custom_call.1} parent=1 // loop_footer_branch
      %15 = sbr.rel target = $region3
    $region8: #{tpu_custom_call.1} parent=1 // loop_exit
      _
    %2310 = vsyncpa [#allocation3], 1
    %s2311 = scalar_lea.sflag [#allocation3], 1
    %2312 = vsyncpa %s2311, 1

</llo_original>
